<compile_context>
chip_gen: v7x
topology: tpu7x:2x2x1
jax: 0.10.0
libtpu: 0.0.40
codegen_flags: <defaults>
</compile_context>

<pallas_src>
import math

import numpy as np
import jax
import jax.numpy as jnp
from jax.experimental import pallas as pl
from jax.experimental.pallas import tpu as pltpu


# ----------------------------------------------------------------------------
# small helpers
# ----------------------------------------------------------------------------
def _ru(x, m):
    """Round x up to a multiple of m."""
    return ((x + m - 1) // m) * m


def _low_slice_bounds(n):
    # Faithful to the PyTorch `int(n / 4)` / `int(n / 4 * 3)` indexing.
    return int(n / 4), int(n / 4 * 3)


# ----------------------------------------------------------------------------
# host-side composite DFT matrices (numpy float64, built once per shape)
# ----------------------------------------------------------------------------
def _low_factor(n):
    """(nh, n) complex matrix composing, along one length-n axis:
    fft(norm='forward') -> fftshift -> central [n/4, 3n/4) slice -> ifftshift
    (length nh) -> unnormalized inverse DFT.  The 1/n norm is folded in."""
    r0, r1 = _low_slice_bounds(n)
    nh = r1 - r0
    p = np.arange(nh)
    rho = (r0 + (p + nh // 2) % nh - n // 2) % n            # source frequency bins
    e1 = np.exp(2j * np.pi * np.outer(np.arange(nh), p) / nh)      # (nh, nh) iDFT
    e2 = np.exp(-2j * np.pi * np.outer(rho, np.arange(n)) / n)     # (nh, n) fwd DFT rows
    return (e1 @ e2) / n


def _high_factor(n):
    """(n, n) complex circulant band-keep filter: keeps the frequency bins that
    land inside the fftshift-central [n/4, 3n/4) band (1/n norm folded in)."""
    r0, r1 = _low_slice_bounds(n)
    k = np.arange(n)
    ks = (k + n // 2) % n
    kk = k[(ks >= r0) & (ks < r1)]
    e1 = np.exp(2j * np.pi * np.outer(np.arange(n), kk) / n)       # (n, |K|)
    e2 = np.exp(-2j * np.pi * np.outer(kk, np.arange(n)) / n)      # (|K|, n)
    return (e1 @ e2) / n


def _pad2(a, rows, cols):
    out = np.zeros((rows, cols), np.float64)
    out[: a.shape[0], : a.shape[1]] = a
    return out


# ----------------------------------------------------------------------------
# fused Pallas kernel: both DFT branches for P planes per grid step
# ----------------------------------------------------------------------------
def _make_kernel(P, P2, W2, HH, WW):
    def kernel(x_ref, rl_ref, cl_ref, rh_ref, ch_ref, low_ref, high_ref):
        # P is a small static int -> unrolled; every matmul hits the MXU with
        # bf16 operands and f32 accumulation.
        for p in range(P):
            x = x_ref[p]                                         # (KH, KW) bf16
            # ---- low branch:  |Rl @ x @ Cl|  (rows: [re; im], cols: [re | im])
            a = jnp.dot(rl_ref[...], x, preferred_element_type=jnp.float32)
            y = jnp.dot(a.astype(jnp.bfloat16), cl_ref[...],
                        preferred_element_type=jnp.float32)       # (2*P2, 2*W2)
            yre = y[:P2, :W2] - y[P2:, W2:]
            yim = y[:P2, W2:] + y[P2:, :W2]
            low_ref[p] = jnp.sqrt(yre * yre + yim * yim)
            # ---- high branch: |Rh @ x @ Ch|
            a = jnp.dot(rh_ref[...], x, preferred_element_type=jnp.float32)
            y = jnp.dot(a.astype(jnp.bfloat16), ch_ref[...],
                        preferred_element_type=jnp.float32)       # (2*HH, 2*WW)
            yre = y[:HH, :WW] - y[HH:, WW:]
            yim = y[:HH, WW:] + y[HH:, :WW]
            high_ref[p] = jnp.sqrt(yre * yre + yim * yim)

    return kernel


# ----------------------------------------------------------------------------
# forward pass (mirrors FLC_Pooling_conv_blurred.forward, drop != 0 branch)
# ----------------------------------------------------------------------------
def flc_pooling_conv_blurred(x, conv_w, transpose=True):
    """x: [B, C, H, W] float32 (NCHW).  conv_w: [4C, C] bias-free 1x1 conv weights.
    `transpose` is kept for API parity; the transpose(2,3)/transpose-back pair is
    mathematically inert for this separable per-axis transform."""
    del transpose
    x = jnp.asarray(x, jnp.float32)
    B, C, H, W = x.shape
    H2, W2v = H // 2, W // 2

    # reflect pad: (left, right, top, bottom) = (3W//4+1, 3W//4, 3H//4+1, 3H//4)
    xp = jnp.pad(x, [(0, 0), (0, 0),
                     (3 * H // 4 + 1, 3 * H // 4), (3 * W // 4 + 1, 3 * W // 4)],
                 mode='reflect')
    Hp, Wp = xp.shape[2], xp.shape[3]

    # ---- composite (shift/slice/crop/norm folded) matrices, built on host ----
    L_H = _low_factor(Hp)            # (nhH, Hp)
    L_W = _low_factor(Wp)            # (nhW, Wp)
    G_H = _high_factor(Hp)           # (Hp, Hp)
    G_W = _high_factor(Wp)           # (Wp, Wp)
    nhH, nhW = L_H.shape[0], L_W.shape[0]
    # torchvision CenterCrop offsets (crop is always smaller than the image here)
    tl = int(round((nhH - H2) / 2.0))
    ll = int(round((nhW - W2v) / 2.0))
    th = int(round((Hp - H) / 2.0))
    lh = int(round((Wp - W) / 2.0))
    Rl = L_H[tl:tl + H2, :]          # (H/2, Hp)
    Cl = L_W.T[:, ll:ll + W2v]       # (Wp, W/2)
    Rh = G_H[th:th + H, :]           # (H, Hp)
    Ch = G_W.T[:, lh:lh + W]         # (Wp, W)

    # ---- TPU alignment: lanes -> x128, sublanes -> x8 ----
    KH, KW = _ru(Hp, 128), _ru(Wp, 128)          # contraction dims
    P2, W2 = _ru(H2, 8), _ru(W2v, 128)           # low-branch output dims
    HH, WW = _ru(H, 8), _ru(W, 128)              # high-branch output dims

    mdt = jnp.bfloat16
    rl = jnp.asarray(np.concatenate([_pad2(Rl.real, P2, KH),
                                     _pad2(Rl.imag, P2, KH)], 0), mdt)   # (2P2, KH)
    cl = jnp.asarray(np.concatenate([_pad2(Cl.real, KW, W2),
                                     _pad2(Cl.imag, KW, W2)], 1), mdt)   # (KW, 2W2)
    rh = jnp.asarray(np.concatenate([_pad2(Rh.real, HH, KH),
                                     _pad2(Rh.imag, HH, KH)], 0), mdt)   # (2HH, KH)
    ch = jnp.asarray(np.concatenate([_pad2(Ch.real, KW, WW),
                                     _pad2(Ch.imag, KW, WW)], 1), mdt)   # (KW, 2WW)

    BC = B * C
    xpad = jnp.pad(xp.reshape(BC, Hp, Wp),
                   ((0, 0), (0, KH - Hp), (0, KW - Wp))).astype(mdt)

    # ---- plane batching (amortize per-grid-step overhead) & VMEM sizing ----
    per_plane = KH * KW * 2 + (P2 * W2 + HH * WW) * 4          # bf16 in + f32 outs
    fixed = 2 * 2 * (rl.size + cl.size + rh.size + ch.size)    # matrices (bf16 x2 buf)
    interm = 4 * (2 * P2 * KW + 4 * P2 * W2 + 2 * HH * KW + 4 * HH * WW)
    budget = 32 * 1024 * 1024
    P = 1
    for cand in range(1, BC + 1):
        if BC % cand:
            continue
        if BC >= 2 and BC // cand < 2:        # keep >= 2 grid steps (v7x megacore)
            continue
        if fixed + interm + 2 * cand * per_plane <= budget:
            P = cand
    steps = BC // P
    vmem_limit = int(min(64 * 1024 * 1024,
                         max(32 * 1024 * 1024,
                             2 * (fixed + interm + 2 * P * per_plane))))

    kernel = _make_kernel(P, P2, W2, HH, WW)
    low, high = pl.pallas_call(
        kernel,
        out_shape=(jax.ShapeDtypeStruct((BC, P2, W2), jnp.float32),
                   jax.ShapeDtypeStruct((BC, HH, WW), jnp.float32)),
        grid_spec=pltpu.PrefetchScalarGridSpec(
            num_scalar_prefetch=0,
            grid=(steps,),
            in_specs=[pl.BlockSpec((P, KH, KW), lambda i: (i, 0, 0)),
                      pl.BlockSpec((2 * P2, KH), lambda i: (0, 0)),
                      pl.BlockSpec((KW, 2 * W2), lambda i: (0, 0)),
                      pl.BlockSpec((2 * HH, KH), lambda i: (0, 0)),
                      pl.BlockSpec((KW, 2 * WW), lambda i: (0, 0))],
            out_specs=(pl.BlockSpec((P, P2, W2), lambda i: (i, 0, 0)),
                       pl.BlockSpec((P, HH, WW), lambda i: (i, 0, 0)))),
        compiler_params=pltpu.CompilerParams(
            dimension_semantics=("parallel",),
            vmem_limit_bytes=vmem_limit),
    )(xpad, rl, cl, rh, ch)

    low = low[:, :H2, :W2v].reshape(B, C, H2, W2v)       # cropped |low branch|
    high = high[:, :H, :W].reshape(B, C, H, W)           # cropped |band-limited recon|

    # 1x1 conv (C -> 4C, bias-free); it commutes with the crop folded into Rl/Cl.
    low_out = jnp.einsum('oc,bchw->bohw', jnp.asarray(conv_w, jnp.float32), low)

    # high_part = PixelUnshuffle(2)(x - CenterCrop(H, W)(|band-limited recon|))
    diff = x - high
    high_part = diff.reshape(B, C, H2, 2, W2v, 2).transpose(0, 1, 3, 5, 2, 4)
    high_part = high_part.reshape(B, 4 * C, H2, W2v)

    return low_out + high_part


# ----------------------------------------------------------------------------
# pure-numpy (float64) reference replicating the torch forward for validation
# ----------------------------------------------------------------------------
def _center_crop_np(img, size):
    ch, cw = size
    h, w = img.shape[-2], img.shape[-1]
    top = int(round((h - ch) / 2.0))
    left = int(round((w - cw) / 2.0))
    return img[..., top:top + ch, left:left + cw]


def flc_reference_np(x, conv_w, transpose=True):
    x = np.asarray(x, np.float64)
    conv_w = np.asarray(conv_w, np.float64)
    B, C, H, W = x.shape
    xp = np.pad(x, [(0, 0), (0, 0),
                    (3 * H // 4 + 1, 3 * H // 4), (3 * W // 4 + 1, 3 * W // 4)],
                mode='reflect')
    if transpose:
        xp = np.swapaxes(xp, 2, 3)
    M, N = xp.shape[2], xp.shape[3]
    in_freq = np.fft.fftshift(np.fft.fft2(xp) / (M * N))       # all-dim shift
    r0, r1 = _low_slice_bounds(M)
    c0, c1 = _low_slice_bounds(N)
    low = in_freq[:, :, r0:r1, c0:c1]
    mh, nh = low.shape[2], low.shape[3]
    low = np.abs(np.fft.ifft2(np.fft.ifftshift(low)) * (mh * nh))   # norm='forward' ifft
    if transpose:
        low = np.swapaxes(low, 2, 3)
    low = np.einsum('oc,bchw->bohw', conv_w, low)
    low_c = _center_crop_np(low, (H // 2, W // 2))
    zh = np.zeros_like(in_freq)
    zh[:, :, r0:r1, c0:c1] = in_freq[:, :, r0:r1, c0:c1]
    zh = np.abs(np.fft.ifft2(np.fft.ifftshift(zh)) * (M * N))
    if transpose:
        zh = np.swapaxes(zh, 2, 3)
    diff = x - _center_crop_np(zh, (H, W))
    high = diff.reshape(B, C, H // 2, 2, W // 2, 2)
    high = high.transpose(0, 1, 3, 5, 2, 4).reshape(B, 4 * C, H // 2, W // 2)
    return low_c + high


if __name__ == "__main__":
    key = jax.random.PRNGKey(0)
    kx, kw = jax.random.split(key)
    B, C, H, W = 2, 4, 16, 16
    x = jax.random.normal(kx, (B, C, H, W), dtype=jnp.float32)
    bound = 1.0 / math.sqrt(C)                      # ~ Conv2d(C, 4C, 1, bias=False) init scale
    conv_w = jax.random.uniform(kw, (4 * C, C), jnp.float32, -bound, bound)

    fwd = jax.jit(flc_pooling_conv_blurred)
    out = jax.block_until_ready(fwd(x, conv_w))

    ref = flc_reference_np(np.asarray(x), np.asarray(conv_w), transpose=True)
    assert out.shape == (B, 4 * C, H // 2, W // 2), out.shape
    rel_err = float(np.linalg.norm(np.asarray(out, np.float64) - ref) /
                    (np.linalg.norm(ref) + 1e-12))
    assert rel_err < 5e-2, f"relative error too large: {rel_err}"

    print("KERNEL_OK")
</pallas_src>

<mosaic_0001>
module attributes {stable_mosaic.version = 11 : i64} {
  func.func @kernel(%arg0: i32, %arg1: memref<4x128x128xbf16, #tpu.memory_space<vmem>>, %arg2: memref<16x128xbf16, #tpu.memory_space<vmem>>, %arg3: memref<128x256xbf16, #tpu.memory_space<vmem>>, %arg4: memref<32x128xbf16, #tpu.memory_space<vmem>>, %arg5: memref<128x256xbf16, #tpu.memory_space<vmem>>, %arg6: memref<4x8x128xf32, #tpu.memory_space<vmem>>, %arg7: memref<4x16x128xf32, #tpu.memory_space<vmem>>) attributes {dimension_semantics = [#tpu.dimension_semantics<parallel>], iteration_bounds = array<i64: 2>, scalar_prefetch = 0 : i64, scratch_operands = 0 : i64, tpu.core_type = #tpu.core_type<tc>, window_params = [{transform_indices = @transform_0, window_bounds = array<i64: 4, 128, 128>}, {pipeline_mode = #tpu.pipeline_mode<synchronous>, transform_indices = @transform_1, window_bounds = array<i64: 16, 128>}, {pipeline_mode = #tpu.pipeline_mode<synchronous>, transform_indices = @transform_2, window_bounds = array<i64: 128, 256>}, {pipeline_mode = #tpu.pipeline_mode<synchronous>, transform_indices = @transform_3, window_bounds = array<i64: 32, 128>}, {pipeline_mode = #tpu.pipeline_mode<synchronous>, transform_indices = @transform_4, window_bounds = array<i64: 128, 256>}, {transform_indices = @transform_5, window_bounds = array<i64: 4, 8, 128>}, {transform_indices = @transform_6, window_bounds = array<i64: 4, 16, 128>}]} {
    %c0 = arith.constant 0 : index
    %c0_0 = arith.constant 0 : index
    %c0_1 = arith.constant 0 : index
    %0 = vector.load %arg1[%c0, %c0_0, %c0_1] : memref<4x128x128xbf16, #tpu.memory_space<vmem>>, vector<1x128x128xbf16>
    %1 = vector.shape_cast %0 : vector<1x128x128xbf16> to vector<128x128xbf16>
    %c0_2 = arith.constant 0 : index
    %c0_3 = arith.constant 0 : index
    %2 = vector.load %arg2[%c0_2, %c0_3] : memref<16x128xbf16, #tpu.memory_space<vmem>>, vector<16x128xbf16>
    %cst = arith.constant dense<0.000000e+00> : vector<16x128xf32>
    %3 = tpu.matmul %2, %1, %cst {dimension_numbers = #tpu.dot_dimension_numbers<[1], [0], [0], [1], [0, 0, 1, 1], [], []>} : vector<16x128xbf16>, vector<128x128xbf16>, vector<16x128xf32> -> vector<16x128xf32>
    %4 = arith.truncf %3 : vector<16x128xf32> to vector<16x128xbf16>
    %c0_4 = arith.constant 0 : index
    %c0_5 = arith.constant 0 : index
    %5 = vector.load %arg3[%c0_4, %c0_5] : memref<128x256xbf16, #tpu.memory_space<vmem>>, vector<128x256xbf16>
    %cst_6 = arith.constant dense<0.000000e+00> : vector<16x256xf32>
    %6 = tpu.matmul %4, %5, %cst_6 {dimension_numbers = #tpu.dot_dimension_numbers<[1], [0], [0], [1], [0, 0, 1, 1], [], []>} : vector<16x128xbf16>, vector<128x256xbf16>, vector<16x256xf32> -> vector<16x256xf32>
    %7 = vector.extract_strided_slice %6 {offsets = [0, 0], sizes = [8, 128], strides = [1, 1]} : vector<16x256xf32> to vector<8x128xf32>
    %8 = vector.extract_strided_slice %6 {offsets = [8, 128], sizes = [8, 128], strides = [1, 1]} : vector<16x256xf32> to vector<8x128xf32>
    %9 = arith.subf %7, %8 : vector<8x128xf32>
    %10 = vector.extract_strided_slice %6 {offsets = [0, 128], sizes = [8, 128], strides = [1, 1]} : vector<16x256xf32> to vector<8x128xf32>
    %11 = vector.extract_strided_slice %6 {offsets = [8, 0], sizes = [8, 128], strides = [1, 1]} : vector<16x256xf32> to vector<8x128xf32>
    %12 = arith.addf %10, %11 : vector<8x128xf32>
    %13 = arith.mulf %9, %9 : vector<8x128xf32>
    %14 = arith.mulf %12, %12 : vector<8x128xf32>
    %15 = arith.addf %13, %14 : vector<8x128xf32>
    %16 = math.sqrt %15 : vector<8x128xf32>
    %c0_7 = arith.constant 0 : index
    %c0_8 = arith.constant 0 : index
    %c0_9 = arith.constant 0 : index
    %17 = vector.load %arg6[%c0_7, %c0_8, %c0_9] : memref<4x8x128xf32, #tpu.memory_space<vmem>>, vector<1x8x128xf32>
    %18 = vector.shape_cast %17 : vector<1x8x128xf32> to vector<8x128xf32>
    %19 = vector.shape_cast %16 : vector<8x128xf32> to vector<1x8x128xf32>
    tpu.vector_store %arg6[%c0_7, %c0_8, %c0_9], %19 {strides = array<i32>} : memref<4x8x128xf32, #tpu.memory_space<vmem>>, vector<1x8x128xf32>,
    %c0_10 = arith.constant 0 : index
    %c0_11 = arith.constant 0 : index
    %20 = vector.load %arg4[%c0_10, %c0_11] : memref<32x128xbf16, #tpu.memory_space<vmem>>, vector<32x128xbf16>
    %cst_12 = arith.constant dense<0.000000e+00> : vector<32x128xf32>
    %21 = tpu.matmul %20, %1, %cst_12 {dimension_numbers = #tpu.dot_dimension_numbers<[1], [0], [0], [1], [0, 0, 1, 1], [], []>} : vector<32x128xbf16>, vector<128x128xbf16>, vector<32x128xf32> -> vector<32x128xf32>
    %22 = arith.truncf %21 : vector<32x128xf32> to vector<32x128xbf16>
    %c0_13 = arith.constant 0 : index
    %c0_14 = arith.constant 0 : index
    %23 = vector.load %arg5[%c0_13, %c0_14] : memref<128x256xbf16, #tpu.memory_space<vmem>>, vector<128x256xbf16>
    %cst_15 = arith.constant dense<0.000000e+00> : vector<32x256xf32>
    %24 = tpu.matmul %22, %23, %cst_15 {dimension_numbers = #tpu.dot_dimension_numbers<[1], [0], [0], [1], [0, 0, 1, 1], [], []>} : vector<32x128xbf16>, vector<128x256xbf16>, vector<32x256xf32> -> vector<32x256xf32>
    %25 = vector.extract_strided_slice %24 {offsets = [0, 0], sizes = [16, 128], strides = [1, 1]} : vector<32x256xf32> to vector<16x128xf32>
    %26 = vector.extract_strided_slice %24 {offsets = [16, 128], sizes = [16, 128], strides = [1, 1]} : vector<32x256xf32> to vector<16x128xf32>
    %27 = arith.subf %25, %26 : vector<16x128xf32>
    %28 = vector.extract_strided_slice %24 {offsets = [0, 128], sizes = [16, 128], strides = [1, 1]} : vector<32x256xf32> to vector<16x128xf32>
    %29 = vector.extract_strided_slice %24 {offsets = [16, 0], sizes = [16, 128], strides = [1, 1]} : vector<32x256xf32> to vector<16x128xf32>
    %30 = arith.addf %28, %29 : vector<16x128xf32>
    %31 = arith.mulf %27, %27 : vector<16x128xf32>
    %32 = arith.mulf %30, %30 : vector<16x128xf32>
    %33 = arith.addf %31, %32 : vector<16x128xf32>
    %34 = math.sqrt %33 : vector<16x128xf32>
    %c0_16 = arith.constant 0 : index
    %c0_17 = arith.constant 0 : index
    %c0_18 = arith.constant 0 : index
    %35 = vector.load %arg7[%c0_16, %c0_17, %c0_18] : memref<4x16x128xf32, #tpu.memory_space<vmem>>, vector<1x16x128xf32>
    %36 = vector.shape_cast %35 : vector<1x16x128xf32> to vector<16x128xf32>
    %37 = vector.shape_cast %34 : vector<16x128xf32> to vector<1x16x128xf32>
    tpu.vector_store %arg7[%c0_16, %c0_17, %c0_18], %37 {strides = array<i32>} : memref<4x16x128xf32, #tpu.memory_space<vmem>>, vector<1x16x128xf32>,
    %c1 = arith.constant 1 : index
    %c0_19 = arith.constant 0 : index
    %c0_20 = arith.constant 0 : index
    %38 = vector.load %arg1[%c1, %c0_19, %c0_20] : memref<4x128x128xbf16, #tpu.memory_space<vmem>>, vector<1x128x128xbf16>
    %39 = vector.shape_cast %38 : vector<1x128x128xbf16> to vector<128x128xbf16>
    %c0_21 = arith.constant 0 : index
    %c0_22 = arith.constant 0 : index
    %40 = vector.load %arg2[%c0_21, %c0_22] : memref<16x128xbf16, #tpu.memory_space<vmem>>, vector<16x128xbf16>
    %cst_23 = arith.constant dense<0.000000e+00> : vector<16x128xf32>
    %41 = tpu.matmul %40, %39, %cst_23 {dimension_numbers = #tpu.dot_dimension_numbers<[1], [0], [0], [1], [0, 0, 1, 1], [], []>} : vector<16x128xbf16>, vector<128x128xbf16>, vector<16x128xf32> -> vector<16x128xf32>
    %42 = arith.truncf %41 : vector<16x128xf32> to vector<16x128xbf16>
    %c0_24 = arith.constant 0 : index
    %c0_25 = arith.constant 0 : index
    %43 = vector.load %arg3[%c0_24, %c0_25] : memref<128x256xbf16, #tpu.memory_space<vmem>>, vector<128x256xbf16>
    %cst_26 = arith.constant dense<0.000000e+00> : vector<16x256xf32>
    %44 = tpu.matmul %42, %43, %cst_26 {dimension_numbers = #tpu.dot_dimension_numbers<[1], [0], [0], [1], [0, 0, 1, 1], [], []>} : vector<16x128xbf16>, vector<128x256xbf16>, vector<16x256xf32> -> vector<16x256xf32>
    %45 = vector.extract_strided_slice %44 {offsets = [0, 0], sizes = [8, 128], strides = [1, 1]} : vector<16x256xf32> to vector<8x128xf32>
    %46 = vector.extract_strided_slice %44 {offsets = [8, 128], sizes = [8, 128], strides = [1, 1]} : vector<16x256xf32> to vector<8x128xf32>
    %47 = arith.subf %45, %46 : vector<8x128xf32>
    %48 = vector.extract_strided_slice %44 {offsets = [0, 128], sizes = [8, 128], strides = [1, 1]} : vector<16x256xf32> to vector<8x128xf32>
    %49 = vector.extract_strided_slice %44 {offsets = [8, 0], sizes = [8, 128], strides = [1, 1]} : vector<16x256xf32> to vector<8x128xf32>
    %50 = arith.addf %48, %49 : vector<8x128xf32>
    %51 = arith.mulf %47, %47 : vector<8x128xf32>
    %52 = arith.mulf %50, %50 : vector<8x128xf32>
    %53 = arith.addf %51, %52 : vector<8x128xf32>
    %54 = math.sqrt %53 : vector<8x128xf32>
    %c1_27 = arith.constant 1 : index
    %c0_28 = arith.constant 0 : index
    %c0_29 = arith.constant 0 : index
    %55 = vector.load %arg6[%c1_27, %c0_28, %c0_29] : memref<4x8x128xf32, #tpu.memory_space<vmem>>, vector<1x8x128xf32>
    %56 = vector.shape_cast %55 : vector<1x8x128xf32> to vector<8x128xf32>
    %57 = vector.shape_cast %54 : vector<8x128xf32> to vector<1x8x128xf32>
    tpu.vector_store %arg6[%c1_27, %c0_28, %c0_29], %57 {strides = array<i32>} : memref<4x8x128xf32, #tpu.memory_space<vmem>>, vector<1x8x128xf32>,
    %c0_30 = arith.constant 0 : index
    %c0_31 = arith.constant 0 : index
    %58 = vector.load %arg4[%c0_30, %c0_31] : memref<32x128xbf16, #tpu.memory_space<vmem>>, vector<32x128xbf16>
    %cst_32 = arith.constant dense<0.000000e+00> : vector<32x128xf32>
    %59 = tpu.matmul %58, %39, %cst_32 {dimension_numbers = #tpu.dot_dimension_numbers<[1], [0], [0], [1], [0, 0, 1, 1], [], []>} : vector<32x128xbf16>, vector<128x128xbf16>, vector<32x128xf32> -> vector<32x128xf32>
    %60 = arith.truncf %59 : vector<32x128xf32> to vector<32x128xbf16>
    %c0_33 = arith.constant 0 : index
    %c0_34 = arith.constant 0 : index
    %61 = vector.load %arg5[%c0_33, %c0_34] : memref<128x256xbf16, #tpu.memory_space<vmem>>, vector<128x256xbf16>
    %cst_35 = arith.constant dense<0.000000e+00> : vector<32x256xf32>
    %62 = tpu.matmul %60, %61, %cst_35 {dimension_numbers = #tpu.dot_dimension_numbers<[1], [0], [0], [1], [0, 0, 1, 1], [], []>} : vector<32x128xbf16>, vector<128x256xbf16>, vector<32x256xf32> -> vector<32x256xf32>
    %63 = vector.extract_strided_slice %62 {offsets = [0, 0], sizes = [16, 128], strides = [1, 1]} : vector<32x256xf32> to vector<16x128xf32>
    %64 = vector.extract_strided_slice %62 {offsets = [16, 128], sizes = [16, 128], strides = [1, 1]} : vector<32x256xf32> to vector<16x128xf32>
    %65 = arith.subf %63, %64 : vector<16x128xf32>
    %66 = vector.extract_strided_slice %62 {offsets = [0, 128], sizes = [16, 128], strides = [1, 1]} : vector<32x256xf32> to vector<16x128xf32>
    %67 = vector.extract_strided_slice %62 {offsets = [16, 0], sizes = [16, 128], strides = [1, 1]} : vector<32x256xf32> to vector<16x128xf32>
    %68 = arith.addf %66, %67 : vector<16x128xf32>
    %69 = arith.mulf %65, %65 : vector<16x128xf32>
    %70 = arith.mulf %68, %68 : vector<16x128xf32>
    %71 = arith.addf %69, %70 : vector<16x128xf32>
    %72 = math.sqrt %71 : vector<16x128xf32>
    %c1_36 = arith.constant 1 : index
    %c0_37 = arith.constant 0 : index
    %c0_38 = arith.constant 0 : index
    %73 = vector.load %arg7[%c1_36, %c0_37, %c0_38] : memref<4x16x128xf32, #tpu.memory_space<vmem>>, vector<1x16x128xf32>
    %74 = vector.shape_cast %73 : vector<1x16x128xf32> to vector<16x128xf32>
    %75 = vector.shape_cast %72 : vector<16x128xf32> to vector<1x16x128xf32>
    tpu.vector_store %arg7[%c1_36, %c0_37, %c0_38], %75 {strides = array<i32>} : memref<4x16x128xf32, #tpu.memory_space<vmem>>, vector<1x16x128xf32>,
    %c2 = arith.constant 2 : index
    %c0_39 = arith.constant 0 : index
    %c0_40 = arith.constant 0 : index
    %76 = vector.load %arg1[%c2, %c0_39, %c0_40] : memref<4x128x128xbf16, #tpu.memory_space<vmem>>, vector<1x128x128xbf16>
    %77 = vector.shape_cast %76 : vector<1x128x128xbf16> to vector<128x128xbf16>
    %c0_41 = arith.constant 0 : index
    %c0_42 = arith.constant 0 : index
    %78 = vector.load %arg2[%c0_41, %c0_42] : memref<16x128xbf16, #tpu.memory_space<vmem>>, vector<16x128xbf16>
    %cst_43 = arith.constant dense<0.000000e+00> : vector<16x128xf32>
    %79 = tpu.matmul %78, %77, %cst_43 {dimension_numbers = #tpu.dot_dimension_numbers<[1], [0], [0], [1], [0, 0, 1, 1], [], []>} : vector<16x128xbf16>, vector<128x128xbf16>, vector<16x128xf32> -> vector<16x128xf32>
    %80 = arith.truncf %79 : vector<16x128xf32> to vector<16x128xbf16>
    %c0_44 = arith.constant 0 : index
    %c0_45 = arith.constant 0 : index
    %81 = vector.load %arg3[%c0_44, %c0_45] : memref<128x256xbf16, #tpu.memory_space<vmem>>, vector<128x256xbf16>
    %cst_46 = arith.constant dense<0.000000e+00> : vector<16x256xf32>
    %82 = tpu.matmul %80, %81, %cst_46 {dimension_numbers = #tpu.dot_dimension_numbers<[1], [0], [0], [1], [0, 0, 1, 1], [], []>} : vector<16x128xbf16>, vector<128x256xbf16>, vector<16x256xf32> -> vector<16x256xf32>
    %83 = vector.extract_strided_slice %82 {offsets = [0, 0], sizes = [8, 128], strides = [1, 1]} : vector<16x256xf32> to vector<8x128xf32>
    %84 = vector.extract_strided_slice %82 {offsets = [8, 128], sizes = [8, 128], strides = [1, 1]} : vector<16x256xf32> to vector<8x128xf32>
    %85 = arith.subf %83, %84 : vector<8x128xf32>
    %86 = vector.extract_strided_slice %82 {offsets = [0, 128], sizes = [8, 128], strides = [1, 1]} : vector<16x256xf32> to vector<8x128xf32>
    %87 = vector.extract_strided_slice %82 {offsets = [8, 0], sizes = [8, 128], strides = [1, 1]} : vector<16x256xf32> to vector<8x128xf32>
    %88 = arith.addf %86, %87 : vector<8x128xf32>
    %89 = arith.mulf %85, %85 : vector<8x128xf32>
    %90 = arith.mulf %88, %88 : vector<8x128xf32>
    %91 = arith.addf %89, %90 : vector<8x128xf32>
    %92 = math.sqrt %91 : vector<8x128xf32>
    %c2_47 = arith.constant 2 : index
    %c0_48 = arith.constant 0 : index
    %c0_49 = arith.constant 0 : index
    %93 = vector.load %arg6[%c2_47, %c0_48, %c0_49] : memref<4x8x128xf32, #tpu.memory_space<vmem>>, vector<1x8x128xf32>
    %94 = vector.shape_cast %93 : vector<1x8x128xf32> to vector<8x128xf32>
    %95 = vector.shape_cast %92 : vector<8x128xf32> to vector<1x8x128xf32>
    tpu.vector_store %arg6[%c2_47, %c0_48, %c0_49], %95 {strides = array<i32>} : memref<4x8x128xf32, #tpu.memory_space<vmem>>, vector<1x8x128xf32>,
    %c0_50 = arith.constant 0 : index
    %c0_51 = arith.constant 0 : index
    %96 = vector.load %arg4[%c0_50, %c0_51] : memref<32x128xbf16, #tpu.memory_space<vmem>>, vector<32x128xbf16>
    %cst_52 = arith.constant dense<0.000000e+00> : vector<32x128xf32>
    %97 = tpu.matmul %96, %77, %cst_52 {dimension_numbers = #tpu.dot_dimension_numbers<[1], [0], [0], [1], [0, 0, 1, 1], [], []>} : vector<32x128xbf16>, vector<128x128xbf16>, vector<32x128xf32> -> vector<32x128xf32>
    %98 = arith.truncf %97 : vector<32x128xf32> to vector<32x128xbf16>
    %c0_53 = arith.constant 0 : index
    %c0_54 = arith.constant 0 : index
    %99 = vector.load %arg5[%c0_53, %c0_54] : memref<128x256xbf16, #tpu.memory_space<vmem>>, vector<128x256xbf16>
    %cst_55 = arith.constant dense<0.000000e+00> : vector<32x256xf32>
    %100 = tpu.matmul %98, %99, %cst_55 {dimension_numbers = #tpu.dot_dimension_numbers<[1], [0], [0], [1], [0, 0, 1, 1], [], []>} : vector<32x128xbf16>, vector<128x256xbf16>, vector<32x256xf32> -> vector<32x256xf32>
    %101 = vector.extract_strided_slice %100 {offsets = [0, 0], sizes = [16, 128], strides = [1, 1]} : vector<32x256xf32> to vector<16x128xf32>
    %102 = vector.extract_strided_slice %100 {offsets = [16, 128], sizes = [16, 128], strides = [1, 1]} : vector<32x256xf32> to vector<16x128xf32>
    %103 = arith.subf %101, %102 : vector<16x128xf32>
    %104 = vector.extract_strided_slice %100 {offsets = [0, 128], sizes = [16, 128], strides = [1, 1]} : vector<32x256xf32> to vector<16x128xf32>
    %105 = vector.extract_strided_slice %100 {offsets = [16, 0], sizes = [16, 128], strides = [1, 1]} : vector<32x256xf32> to vector<16x128xf32>
    %106 = arith.addf %104, %105 : vector<16x128xf32>
    %107 = arith.mulf %103, %103 : vector<16x128xf32>
    %108 = arith.mulf %106, %106 : vector<16x128xf32>
    %109 = arith.addf %107, %108 : vector<16x128xf32>
    %110 = math.sqrt %109 : vector<16x128xf32>
    %c2_56 = arith.constant 2 : index
    %c0_57 = arith.constant 0 : index
    %c0_58 = arith.constant 0 : index
    %111 = vector.load %arg7[%c2_56, %c0_57, %c0_58] : memref<4x16x128xf32, #tpu.memory_space<vmem>>, vector<1x16x128xf32>
    %112 = vector.shape_cast %111 : vector<1x16x128xf32> to vector<16x128xf32>
    %113 = vector.shape_cast %110 : vector<16x128xf32> to vector<1x16x128xf32>
    tpu.vector_store %arg7[%c2_56, %c0_57, %c0_58], %113 {strides = array<i32>} : memref<4x16x128xf32, #tpu.memory_space<vmem>>, vector<1x16x128xf32>,
    %c3 = arith.constant 3 : index
    %c0_59 = arith.constant 0 : index
    %c0_60 = arith.constant 0 : index
    %114 = vector.load %arg1[%c3, %c0_59, %c0_60] : memref<4x128x128xbf16, #tpu.memory_space<vmem>>, vector<1x128x128xbf16>
    %115 = vector.shape_cast %114 : vector<1x128x128xbf16> to vector<128x128xbf16>
    %c0_61 = arith.constant 0 : index
    %c0_62 = arith.constant 0 : index
    %116 = vector.load %arg2[%c0_61, %c0_62] : memref<16x128xbf16, #tpu.memory_space<vmem>>, vector<16x128xbf16>
    %cst_63 = arith.constant dense<0.000000e+00> : vector<16x128xf32>
    %117 = tpu.matmul %116, %115, %cst_63 {dimension_numbers = #tpu.dot_dimension_numbers<[1], [0], [0], [1], [0, 0, 1, 1], [], []>} : vector<16x128xbf16>, vector<128x128xbf16>, vector<16x128xf32> -> vector<16x128xf32>
    %118 = arith.truncf %117 : vector<16x128xf32> to vector<16x128xbf16>
    %c0_64 = arith.constant 0 : index
    %c0_65 = arith.constant 0 : index
    %119 = vector.load %arg3[%c0_64, %c0_65] : memref<128x256xbf16, #tpu.memory_space<vmem>>, vector<128x256xbf16>
    %cst_66 = arith.constant dense<0.000000e+00> : vector<16x256xf32>
    %120 = tpu.matmul %118, %119, %cst_66 {dimension_numbers = #tpu.dot_dimension_numbers<[1], [0], [0], [1], [0, 0, 1, 1], [], []>} : vector<16x128xbf16>, vector<128x256xbf16>, vector<16x256xf32> -> vector<16x256xf32>
    %121 = vector.extract_strided_slice %120 {offsets = [0, 0], sizes = [8, 128], strides = [1, 1]} : vector<16x256xf32> to vector<8x128xf32>
    %122 = vector.extract_strided_slice %120 {offsets = [8, 128], sizes = [8, 128], strides = [1, 1]} : vector<16x256xf32> to vector<8x128xf32>
    %123 = arith.subf %121, %122 : vector<8x128xf32>
    %124 = vector.extract_strided_slice %120 {offsets = [0, 128], sizes = [8, 128], strides = [1, 1]} : vector<16x256xf32> to vector<8x128xf32>
    %125 = vector.extract_strided_slice %120 {offsets = [8, 0], sizes = [8, 128], strides = [1, 1]} : vector<16x256xf32> to vector<8x128xf32>
    %126 = arith.addf %124, %125 : vector<8x128xf32>
    %127 = arith.mulf %123, %123 : vector<8x128xf32>
    %128 = arith.mulf %126, %126 : vector<8x128xf32>
    %129 = arith.addf %127, %128 : vector<8x128xf32>
    %130 = math.sqrt %129 : vector<8x128xf32>
    %c3_67 = arith.constant 3 : index
    %c0_68 = arith.constant 0 : index
    %c0_69 = arith.constant 0 : index
    %131 = vector.load %arg6[%c3_67, %c0_68, %c0_69] : memref<4x8x128xf32, #tpu.memory_space<vmem>>, vector<1x8x128xf32>
    %132 = vector.shape_cast %131 : vector<1x8x128xf32> to vector<8x128xf32>
    %133 = vector.shape_cast %130 : vector<8x128xf32> to vector<1x8x128xf32>
    tpu.vector_store %arg6[%c3_67, %c0_68, %c0_69], %133 {strides = array<i32>} : memref<4x8x128xf32, #tpu.memory_space<vmem>>, vector<1x8x128xf32>,
    %c0_70 = arith.constant 0 : index
    %c0_71 = arith.constant 0 : index
    %134 = vector.load %arg4[%c0_70, %c0_71] : memref<32x128xbf16, #tpu.memory_space<vmem>>, vector<32x128xbf16>
    %cst_72 = arith.constant dense<0.000000e+00> : vector<32x128xf32>
    %135 = tpu.matmul %134, %115, %cst_72 {dimension_numbers = #tpu.dot_dimension_numbers<[1], [0], [0], [1], [0, 0, 1, 1], [], []>} : vector<32x128xbf16>, vector<128x128xbf16>, vector<32x128xf32> -> vector<32x128xf32>
    %136 = arith.truncf %135 : vector<32x128xf32> to vector<32x128xbf16>
    %c0_73 = arith.constant 0 : index
    %c0_74 = arith.constant 0 : index
    %137 = vector.load %arg5[%c0_73, %c0_74] : memref<128x256xbf16, #tpu.memory_space<vmem>>, vector<128x256xbf16>
    %cst_75 = arith.constant dense<0.000000e+00> : vector<32x256xf32>
    %138 = tpu.matmul %136, %137, %cst_75 {dimension_numbers = #tpu.dot_dimension_numbers<[1], [0], [0], [1], [0, 0, 1, 1], [], []>} : vector<32x128xbf16>, vector<128x256xbf16>, vector<32x256xf32> -> vector<32x256xf32>
    %139 = vector.extract_strided_slice %138 {offsets = [0, 0], sizes = [16, 128], strides = [1, 1]} : vector<32x256xf32> to vector<16x128xf32>
    %140 = vector.extract_strided_slice %138 {offsets = [16, 128], sizes = [16, 128], strides = [1, 1]} : vector<32x256xf32> to vector<16x128xf32>
    %141 = arith.subf %139, %140 : vector<16x128xf32>
    %142 = vector.extract_strided_slice %138 {offsets = [0, 128], sizes = [16, 128], strides = [1, 1]} : vector<32x256xf32> to vector<16x128xf32>
    %143 = vector.extract_strided_slice %138 {offsets = [16, 0], sizes = [16, 128], strides = [1, 1]} : vector<32x256xf32> to vector<16x128xf32>
    %144 = arith.addf %142, %143 : vector<16x128xf32>
    %145 = arith.mulf %141, %141 : vector<16x128xf32>
    %146 = arith.mulf %144, %144 : vector<16x128xf32>
    %147 = arith.addf %145, %146 : vector<16x128xf32>
    %148 = math.sqrt %147 : vector<16x128xf32>
    %c3_76 = arith.constant 3 : index
    %c0_77 = arith.constant 0 : index
    %c0_78 = arith.constant 0 : index
    %149 = vector.load %arg7[%c3_76, %c0_77, %c0_78] : memref<4x16x128xf32, #tpu.memory_space<vmem>>, vector<1x16x128xf32>
    %150 = vector.shape_cast %149 : vector<1x16x128xf32> to vector<16x128xf32>
    %151 = vector.shape_cast %148 : vector<16x128xf32> to vector<1x16x128xf32>
    tpu.vector_store %arg7[%c3_76, %c0_77, %c0_78], %151 {strides = array<i32>} : memref<4x16x128xf32, #tpu.memory_space<vmem>>, vector<1x16x128xf32>,
    return
  }
  func.func @transform_0(%arg0: i32) -> (i32, i32, i32) {
    %c0_i32 = arith.constant 0 : i32
    %c0_i32_0 = arith.constant 0 : i32
    %c0_i32_1 = arith.constant 0 : i32
    return %arg0, %c0_i32, %c0_i32_0 : i32, i32, i32
  }
  func.func @transform_1(%arg0: i32) -> (i32, i32) {
    %c0_i32 = arith.constant 0 : i32
    %c0_i32_0 = arith.constant 0 : i32
    %c0_i32_1 = arith.constant 0 : i32
    return %c0_i32, %c0_i32_0 : i32, i32
  }
  func.func @transform_2(%arg0: i32) -> (i32, i32) {
    %c0_i32 = arith.constant 0 : i32
    %c0_i32_0 = arith.constant 0 : i32
    %c0_i32_1 = arith.constant 0 : i32
    return %c0_i32, %c0_i32_0 : i32, i32
  }
  func.func @transform_3(%arg0: i32) -> (i32, i32) {
    %c0_i32 = arith.constant 0 : i32
    %c0_i32_0 = arith.constant 0 : i32
    %c0_i32_1 = arith.constant 0 : i32
    return %c0_i32, %c0_i32_0 : i32, i32
  }
  func.func @transform_4(%arg0: i32) -> (i32, i32) {
    %c0_i32 = arith.constant 0 : i32
    %c0_i32_0 = arith.constant 0 : i32
    %c0_i32_1 = arith.constant 0 : i32
    return %c0_i32, %c0_i32_0 : i32, i32
  }
  func.func @transform_5(%arg0: i32) -> (i32, i32, i32) {
    %c0_i32 = arith.constant 0 : i32
    %c0_i32_0 = arith.constant 0 : i32
    %c0_i32_1 = arith.constant 0 : i32
    return %arg0, %c0_i32, %c0_i32_0 : i32, i32, i32
  }
  func.func @transform_6(%arg0: i32) -> (i32, i32, i32) {
    %c0_i32 = arith.constant 0 : i32
    %c0_i32_0 = arith.constant 0 : i32
    %c0_i32_1 = arith.constant 0 : i32
    return %arg0, %c0_i32, %c0_i32_0 : i32, i32, i32
  }
}

</mosaic_0001>

<llo_original>
// kernel: sub.1
$region0: #{sub.1}
  #allocation0 [shape = 's32[1]{0}', space=sflag, size = 0x4, scoped, tag = 'scoped memory for sub.1']
  %s0 = inlined_call_operand.vmem [shape: f32[2,4,16,16], index: 0, kind: input, shape index: {}]
  %s1 = inlined_call_operand.vmem [shape: f32[2,4,16,16], index: 1, kind: input, shape index: {}]
  %s2 = inlined_call_operand.vmem [shape: f32[2,4,16,16], index: 2, kind: output, shape index: {}]
  %v3 = vld [vmem:[%s0] sm:$0xff]
  %v4 = vld [vmem:[%s1] sm:$0xff]
  %5 = xla_tuple %v3, %v4
  %6 = xla_tuple %5
  %v7 = vsub.f32 %v3, %v4
  %8 = xla_tuple %v7
  %9 = vst [vmem:[%s2] sm:$0xff] %v7
  %s10 = scalar_lea.vmem %s0, 64
  %v11 = vld [vmem:[%s10] sm:$0xff]
  %s12 = scalar_lea.vmem %s1, 64
  %v13 = vld [vmem:[%s12] sm:$0xff]
  %14 = xla_tuple %v11, %v13
  %15 = xla_tuple %14
  %v16 = vsub.f32 %v11, %v13
  %17 = xla_tuple %v16
  %s18 = scalar_lea.vmem %s2, 64
  %19 = vst [vmem:[%s18] sm:$0xff] %v16
  %s20 = scalar_lea.vmem %s0, 16
  %v21 = vld [vmem:[%s20] sm:$0xff]
  %s22 = scalar_lea.vmem %s1, 16
  %v23 = vld [vmem:[%s22] sm:$0xff]
  %24 = xla_tuple %v21, %v23
  %25 = xla_tuple %24
  %v26 = vsub.f32 %v21, %v23
  %27 = xla_tuple %v26
  %s28 = scalar_lea.vmem %s2, 16
  %29 = vst [vmem:[%s28] sm:$0xff] %v26
  %s30 = scalar_lea.vmem %s0, 80
  %v31 = vld [vmem:[%s30] sm:$0xff]
  %s32 = scalar_lea.vmem %s1, 80
  %v33 = vld [vmem:[%s32] sm:$0xff]
  %34 = xla_tuple %v31, %v33
  %35 = xla_tuple %34
  %v36 = vsub.f32 %v31, %v33
  %37 = xla_tuple %v36
  %s38 = scalar_lea.vmem %s2, 80
  %39 = vst [vmem:[%s38] sm:$0xff] %v36
  %s40 = scalar_lea.vmem %s0, 32
  %v41 = vld [vmem:[%s40] sm:$0xff]
  %s42 = scalar_lea.vmem %s1, 32
  %v43 = vld [vmem:[%s42] sm:$0xff]
  %44 = xla_tuple %v41, %v43
  %45 = xla_tuple %44
  %v46 = vsub.f32 %v41, %v43
  %47 = xla_tuple %v46
  %s48 = scalar_lea.vmem %s2, 32
  %49 = vst [vmem:[%s48] sm:$0xff] %v46
  %s50 = scalar_lea.vmem %s0, 96
  %v51 = vld [vmem:[%s50] sm:$0xff]
  %s52 = scalar_lea.vmem %s1, 96
  %v53 = vld [vmem:[%s52] sm:$0xff]
  %54 = xla_tuple %v51, %v53
  %55 = xla_tuple %54
  %v56 = vsub.f32 %v51, %v53
  %57 = xla_tuple %v56
  %s58 = scalar_lea.vmem %s2, 96
  %59 = vst [vmem:[%s58] sm:$0xff] %v56
  %s60 = scalar_lea.vmem %s0, 48
  %v61 = vld [vmem:[%s60] sm:$0xff]
  %s62 = scalar_lea.vmem %s1, 48
  %v63 = vld [vmem:[%s62] sm:$0xff]
  %64 = xla_tuple %v61, %v63
  %65 = xla_tuple %64
  %v66 = vsub.f32 %v61, %v63
  %67 = xla_tuple %v66
  %s68 = scalar_lea.vmem %s2, 48
  %69 = vst [vmem:[%s68] sm:$0xff] %v66
  %s70 = scalar_lea.vmem %s0, 112
  %v71 = vld [vmem:[%s70] sm:$0xff]
  %s72 = scalar_lea.vmem %s1, 112
  %v73 = vld [vmem:[%s72] sm:$0xff]
  %74 = xla_tuple %v71, %v73
  %75 = xla_tuple %74
  %v76 = vsub.f32 %v71, %v73
  %77 = xla_tuple %v76
  %s78 = scalar_lea.vmem %s2, 112
  %79 = vst [vmem:[%s78] sm:$0xff] %v76
  %s80 = scalar_lea.vmem %s0, 8
  %v81 = vld [vmem:[%s80] sm:$0xff]
  %s82 = scalar_lea.vmem %s1, 8
  %v83 = vld [vmem:[%s82] sm:$0xff]
  %84 = xla_tuple %v81, %v83
  %85 = xla_tuple %84
  %v86 = vsub.f32 %v81, %v83
  %87 = xla_tuple %v86
  %s88 = scalar_lea.vmem %s2, 8
  %89 = vst [vmem:[%s88] sm:$0xff] %v86
  %s90 = scalar_lea.vmem %s0, 72
  %v91 = vld [vmem:[%s90] sm:$0xff]
  %s92 = scalar_lea.vmem %s1, 72
  %v93 = vld [vmem:[%s92] sm:$0xff]
  %94 = xla_tuple %v91, %v93
  %95 = xla_tuple %94
  %v96 = vsub.f32 %v91, %v93
  %97 = xla_tuple %v96
  %s98 = scalar_lea.vmem %s2, 72
  %99 = vst [vmem:[%s98] sm:$0xff] %v96
  %s100 = scalar_lea.vmem %s0, 24
  %v101 = vld [vmem:[%s100] sm:$0xff]
  %s102 = scalar_lea.vmem %s1, 24
  %v103 = vld [vmem:[%s102] sm:$0xff]
  %104 = xla_tuple %v101, %v103
  %105 = xla_tuple %104
  %v106 = vsub.f32 %v101, %v103
  %107 = xla_tuple %v106
  %s108 = scalar_lea.vmem %s2, 24
  %109 = vst [vmem:[%s108] sm:$0xff] %v106
  %s110 = scalar_lea.vmem %s0, 88
  %v111 = vld [vmem:[%s110] sm:$0xff]
  %s112 = scalar_lea.vmem %s1, 88
  %v113 = vld [vmem:[%s112] sm:$0xff]
  %114 = xla_tuple %v111, %v113
  %115 = xla_tuple %114
  %v116 = vsub.f32 %v111, %v113
  %117 = xla_tuple %v116
  %s118 = scalar_lea.vmem %s2, 88
  %119 = vst [vmem:[%s118] sm:$0xff] %v116
  %s120 = scalar_lea.vmem %s0, 40
  %v121 = vld [vmem:[%s120] sm:$0xff]
  %s122 = scalar_lea.vmem %s1, 40
  %v123 = vld [vmem:[%s122] sm:$0xff]
  %124 = xla_tuple %v121, %v123
  %125 = xla_tuple %124
  %v126 = vsub.f32 %v121, %v123
  %127 = xla_tuple %v126
  %s128 = scalar_lea.vmem %s2, 40
  %129 = vst [vmem:[%s128] sm:$0xff] %v126
  %s130 = scalar_lea.vmem %s0, 104
  %v131 = vld [vmem:[%s130] sm:$0xff]
  %s132 = scalar_lea.vmem %s1, 104
  %v133 = vld [vmem:[%s132] sm:$0xff]
  %134 = xla_tuple %v131, %v133
  %135 = xla_tuple %134
  %v136 = vsub.f32 %v131, %v133
  %137 = xla_tuple %v136
  %s138 = scalar_lea.vmem %s2, 104
  %139 = vst [vmem:[%s138] sm:$0xff] %v136
  %s140 = scalar_lea.vmem %s0, 56
  %v141 = vld [vmem:[%s140] sm:$0xff]
  %s142 = scalar_lea.vmem %s1, 56
  %v143 = vld [vmem:[%s142] sm:$0xff]
  %144 = xla_tuple %v141, %v143
  %145 = xla_tuple %144
  %v146 = vsub.f32 %v141, %v143
  %147 = xla_tuple %v146
  %s148 = scalar_lea.vmem %s2, 56
  %149 = vst [vmem:[%s148] sm:$0xff] %v146
  %s150 = scalar_lea.vmem %s0, 120
  %v151 = vld [vmem:[%s150] sm:$0xff]
  %s152 = scalar_lea.vmem %s1, 120
  %v153 = vld [vmem:[%s152] sm:$0xff]
  %154 = xla_tuple %v151, %v153
  %155 = xla_tuple %154
  %v156 = vsub.f32 %v151, %v153
  %157 = xla_tuple %v156
  %s158 = scalar_lea.vmem %s2, 120
  %159 = vst [vmem:[%s158] sm:$0xff] %v156

// kernel: flc_pooling_conv_blurred.1
$region0: #{flc_pooling_conv_blurred.1}
  #allocation0 [shape = 'u32[]', space=smem, size = 0x4, offset = 0x4, fixed_abs, tag = 'smem constant byte address 0x4 - core index']
  #allocation1 [shape = 'u32[144,128]{1,0:T(1,128)}', space=vmem, size = 0x12000, scoped, tag = 'internal scratch']
  %s0 = inlined_call_operand.vmem [shape: bf16[8,128,128], index: 0, kind: input, shape index: {}]
  %s1 = inlined_call_operand.vmem [shape: bf16[16,128], index: 1, kind: input, shape index: {}]
  %s2 = inlined_call_operand.vmem [shape: bf16[128,256], index: 2, kind: input, shape index: {}]
  %s3 = inlined_call_operand.vmem [shape: bf16[32,128], index: 3, kind: input, shape index: {}]
  %s4 = inlined_call_operand.vmem [shape: bf16[128,256], index: 4, kind: input, shape index: {}]
  %s5 = inlined_call_operand.vmem [shape: f32[8,8,128], index: 5, kind: output, shape index: {0}]
  %s6 = inlined_call_operand.vmem [shape: f32[8,16,128], index: 6, kind: output, shape index: {1}]
  %7 = xla_tuple %s5, %s6
  %s8 = sld [smem:[#allocation0]]
  $region61: #{flc_pooling_conv_blurred.1} parent=0
    _
  %s10 = ssub.s32 1, %s8
  %s11 = scalar_select 0, %s10, %s8
  loop: start=0, step=1, limit=4
  $region2: #{flc_pooling_conv_blurred.1} parent=0 // loop_pre_header
    _
  $region3: #{flc_pooling_conv_blurred.1} parent=0 // loop_header
    %s13 = sphi 0, %s17
    %p14 = scmp.ge.s32.totalorder %s13, 4
    %s23 = sphi 0, %s25
    %s26 = sphi 0, %s23
    %s27 = sphi 0, %s26
    %s43 = sphi 0, %s27
    %s47 = sphi 0, %s47
    %s49 = sphi 0, %s47
    %s50 = sphi 0, %s49
    %s64 = sphi 0, %s50
    %s68 = sphi 0, %s68
    %s70 = sphi 0, %s68
    %s71 = sphi 0, %s70
    %s85 = sphi 0, %s71
    %s89 = sphi 0, %s89
    %s91 = sphi 0, %s89
    %s92 = sphi 0, %s91
    %s106 = sphi 0, %s92
    %s110 = sphi 0, %s110
    %s112 = sphi 0, %s110
    %s113 = sphi 0, %s112
    %s127 = sphi 0, %s113
    %s133 = sphi 0, %s135
    %s136 = sphi 0, %s133
    %s137 = sphi 0, %s136
    %s153 = sphi 0, %s137
    %s159 = sphi 0, %s161
    %s162 = sphi 0, %s159
    %s163 = sphi 0, %s162
    %s179 = sphi 0, %s163
  $region4: #{flc_pooling_conv_blurred.1} parent=0 // loop_header_branch
    %16 = sbr.rel (%p14) target = $region8
  $region5: #{flc_pooling_conv_blurred.1} parent=0 // loop_body
    %s18 = ssub.s32 %s13, 1
    %s19 = ssub.s32 %s13, 2
    %s20 = sadd.s32 %s13, 1
    %s21 = ssub.s32 %s13, %s20
    %p22 = scmp.eq.s32.totalorder %s21, 0
    %s24 = sadd.s32 %s23, 1
    %s25 = scalar_select %p22, %s23, %s24
    %p28 = pneg %p22
    %p29 = scmp.eq.s32.totalorder %s13, 1
    %p30 = por %p28, %p29
    %p31 = scmp.ne.s32.totalorder %s23, %s26
    %p32 = scmp.eq.s32.totalorder %s13, 0
    %p33 = por %p31, %p32
    %p34 = scmp.ne.s32.totalorder %s23, %s26
    %p35 = scmp.eq.s32.totalorder %s18, 1
    %p36 = por %p34, %p35
    %p37 = scmp.ne.s32.totalorder %s26, %s27
    %p38 = scmp.eq.s32.totalorder %s18, 0
    %p39 = por %p37, %p38
    %p40 = scmp.ne.s32.totalorder %s26, %s27
    %p41 = scmp.eq.s32.totalorder %s19, 1
    %p42 = por %p40, %p41
    %p44 = scmp.ne.s32.totalorder %s27, %s43
    %p45 = scmp.eq.s32.totalorder %s19, 0
    %p46 = por %p44, %p45
    %s48 = sadd.s32 %s47, 1
    %p51 = scmp.eq.s32.totalorder %s13, 1
    %p52 = scmp.ne.s32.totalorder %s47, %s49
    %p53 = scmp.eq.s32.totalorder %s13, 0
    %p54 = por %p52, %p53
    %p55 = scmp.ne.s32.totalorder %s47, %s49
    %p56 = scmp.eq.s32.totalorder %s18, 1
    %p57 = por %p55, %p56
    %p58 = scmp.ne.s32.totalorder %s49, %s50
    %p59 = scmp.eq.s32.totalorder %s18, 0
    %p60 = por %p58, %p59
    %p61 = scmp.ne.s32.totalorder %s49, %s50
    %p62 = scmp.eq.s32.totalorder %s19, 1
    %p63 = por %p61, %p62
    %p65 = scmp.ne.s32.totalorder %s50, %s64
    %p66 = scmp.eq.s32.totalorder %s19, 0
    %p67 = por %p65, %p66
    %s69 = sadd.s32 %s68, 1
    %p72 = scmp.eq.s32.totalorder %s13, 1
    %p73 = scmp.ne.s32.totalorder %s68, %s70
    %p74 = scmp.eq.s32.totalorder %s13, 0
    %p75 = por %p73, %p74
    %p76 = scmp.ne.s32.totalorder %s68, %s70
    %p77 = scmp.eq.s32.totalorder %s18, 1
    %p78 = por %p76, %p77
    %p79 = scmp.ne.s32.totalorder %s70, %s71
    %p80 = scmp.eq.s32.totalorder %s18, 0
    %p81 = por %p79, %p80
    %p82 = scmp.ne.s32.totalorder %s70, %s71
    %p83 = scmp.eq.s32.totalorder %s19, 1
    %p84 = por %p82, %p83
    %p86 = scmp.ne.s32.totalorder %s71, %s85
    %p87 = scmp.eq.s32.totalorder %s19, 0
    %p88 = por %p86, %p87
    %s90 = sadd.s32 %s89, 1
    %p93 = scmp.eq.s32.totalorder %s13, 1
    %p94 = scmp.ne.s32.totalorder %s89, %s91
    %p95 = scmp.eq.s32.totalorder %s13, 0
    %p96 = por %p94, %p95
    %p97 = scmp.ne.s32.totalorder %s89, %s91
    %p98 = scmp.eq.s32.totalorder %s18, 1
    %p99 = por %p97, %p98
    %p100 = scmp.ne.s32.totalorder %s91, %s92
    %p101 = scmp.eq.s32.totalorder %s18, 0
    %p102 = por %p100, %p101
    %p103 = scmp.ne.s32.totalorder %s91, %s92
    %p104 = scmp.eq.s32.totalorder %s19, 1
    %p105 = por %p103, %p104
    %p107 = scmp.ne.s32.totalorder %s92, %s106
    %p108 = scmp.eq.s32.totalorder %s19, 0
    %p109 = por %p107, %p108
    %s111 = sadd.s32 %s110, 1
    %p114 = scmp.eq.s32.totalorder %s13, 1
    %p115 = scmp.ne.s32.totalorder %s110, %s112
    %p116 = scmp.eq.s32.totalorder %s13, 0
    %p117 = por %p115, %p116
    %p118 = scmp.ne.s32.totalorder %s110, %s112
    %p119 = scmp.eq.s32.totalorder %s18, 1
    %p120 = por %p118, %p119
    %p121 = scmp.ne.s32.totalorder %s112, %s113
    %p122 = scmp.eq.s32.totalorder %s18, 0
    %p123 = por %p121, %p122
    %p124 = scmp.ne.s32.totalorder %s112, %s113
    %p125 = scmp.eq.s32.totalorder %s19, 1
    %p126 = por %p124, %p125
    %p128 = scmp.ne.s32.totalorder %s113, %s127
    %p129 = scmp.eq.s32.totalorder %s19, 0
    %p130 = por %p128, %p129
    %s131 = ssub.s32 %s13, %s20
    %p132 = scmp.eq.s32.totalorder %s131, 0
    %s134 = sadd.s32 %s133, 1
    %s135 = scalar_select %p132, %s133, %s134
    %p138 = pneg %p132
    %p139 = scmp.eq.s32.totalorder %s13, 1
    %p140 = por %p138, %p139
    %p141 = scmp.ne.s32.totalorder %s133, %s136
    %p142 = scmp.eq.s32.totalorder %s13, 0
    %p143 = por %p141, %p142
    %p144 = scmp.ne.s32.totalorder %s133, %s136
    %p145 = scmp.eq.s32.totalorder %s18, 1
    %p146 = por %p144, %p145
    %p147 = scmp.ne.s32.totalorder %s136, %s137
    %p148 = scmp.eq.s32.totalorder %s18, 0
    %p149 = por %p147, %p148
    %p150 = scmp.ne.s32.totalorder %s136, %s137
    %p151 = scmp.eq.s32.totalorder %s19, 1
    %p152 = por %p150, %p151
    %p154 = scmp.ne.s32.totalorder %s137, %s153
    %p155 = scmp.eq.s32.totalorder %s19, 0
    %p156 = por %p154, %p155
    %s157 = ssub.s32 %s13, %s20
    %p158 = scmp.eq.s32.totalorder %s157, 0
    %s160 = sadd.s32 %s159, 1
    %s161 = scalar_select %p158, %s159, %s160
    %p164 = pneg %p158
    %p165 = scmp.eq.s32.totalorder %s13, 1
    %p166 = por %p164, %p165
    %p167 = scmp.ne.s32.totalorder %s159, %s162
    %p168 = scmp.eq.s32.totalorder %s13, 0
    %p169 = por %p167, %p168
    %p170 = scmp.ne.s32.totalorder %s159, %s162
    %p171 = scmp.eq.s32.totalorder %s18, 1
    %p172 = por %p170, %p171
    %p173 = scmp.ne.s32.totalorder %s162, %s163
    %p174 = scmp.eq.s32.totalorder %s18, 0
    %p175 = por %p173, %p174
    %p176 = scmp.ne.s32.totalorder %s162, %s163
    %p177 = scmp.eq.s32.totalorder %s19, 1
    %p178 = por %p176, %p177
    %p180 = scmp.ne.s32.totalorder %s163, %s179
    %p181 = scmp.eq.s32.totalorder %s19, 0
    %p182 = por %p180, %p181
    %p183 = scmp.le.s32.totalorder 1, %s13
    %p184 = scmp.lt.s32.totalorder %s13, 3
    %p185 = pnand %p183, %p184
    %p186 = pneg %p185
    // Predicated region
    $region9: #{flc_pooling_conv_blurred.1} parent=5 // pred_check
      _
    $region10: #{flc_pooling_conv_blurred.1} parent=5 // pred_check_branch
      %188 = sbr.rel (%p185) target = $region12
    $region11: #{flc_pooling_conv_blurred.1} parent=5 // pred_region
      %s189 = ssub.s32 %s13, 1
      // Predicated region
      $region13: #{flc_pooling_conv_blurred.1} parent=11 // pred_check
        %p190 = pneg %p60
      $region14: #{flc_pooling_conv_blurred.1} parent=11 // pred_check_branch
        %192 = sbr.rel (%p190) target = $region16
      $region15: #{flc_pooling_conv_blurred.1} parent=11 // pred_region
        _
      $region16: #{flc_pooling_conv_blurred.1} parent=11 // pred_fallthru
        _
      // Predicated region
      $region17: #{flc_pooling_conv_blurred.1} parent=11 // pred_check
        %p193 = pneg %p81
      $region18: #{flc_pooling_conv_blurred.1} parent=11 // pred_check_branch
        %195 = sbr.rel (%p193) target = $region20
      $region19: #{flc_pooling_conv_blurred.1} parent=11 // pred_region
        _
      $region20: #{flc_pooling_conv_blurred.1} parent=11 // pred_fallthru
        _
      // Predicated region
      $region21: #{flc_pooling_conv_blurred.1} parent=11 // pred_check
        %p196 = pneg %p102
      $region22: #{flc_pooling_conv_blurred.1} parent=11 // pred_check_branch
        %198 = sbr.rel (%p196) target = $region24
      $region23: #{flc_pooling_conv_blurred.1} parent=11 // pred_region
        _
      $region24: #{flc_pooling_conv_blurred.1} parent=11 // pred_fallthru
        _
      // Predicated region
      $region25: #{flc_pooling_conv_blurred.1} parent=11 // pred_check
        %p199 = pneg %p123
      $region26: #{flc_pooling_conv_blurred.1} parent=11 // pred_check_branch
        %201 = sbr.rel (%p199) target = $region28
      $region27: #{flc_pooling_conv_blurred.1} parent=11 // pred_region
        _
      $region28: #{flc_pooling_conv_blurred.1} parent=11 // pred_fallthru
        _
    $region12: #{flc_pooling_conv_blurred.1} parent=5 // pred_fallthru
      _
    %p202 = scmp.lt.s32.totalorder %s13, 2
    // Predicated region
    $region29: #{flc_pooling_conv_blurred.1} parent=5 // pred_check
      %p203 = pneg %p202
    $region30: #{flc_pooling_conv_blurred.1} parent=5 // pred_check_branch
      %205 = sbr.rel (%p203) target = $region32
    $region31: #{flc_pooling_conv_blurred.1} parent=5 // pred_region
      // Predicated region
      $region33: #{flc_pooling_conv_blurred.1} parent=31 // pred_check
        %p206 = pneg %p33
      $region34: #{flc_pooling_conv_blurred.1} parent=31 // pred_check_branch
        %208 = sbr.rel (%p206) target = $region36
      $region35: #{flc_pooling_conv_blurred.1} parent=31 // pred_region
        %s209 = smul.u32 4, %s13
        %p210 = scmp.lt.s32.totalorder %s209, 7
        %s211 = scalar_select %p210, %s209, 7
        %s212 = smul.addr %s211, 16
        %s213 = smul.addr %s212, 4
        %s214 = scalar_lea.vmem %s0, %s213
        %s215 = smul.u32 4, %s13
      $region36: #{flc_pooling_conv_blurred.1} parent=31 // pred_fallthru
        _
    $region32: #{flc_pooling_conv_blurred.1} parent=5 // pred_fallthru
      _
    %p216 = scmp.le.s32.totalorder 1, %s13
    %p217 = scmp.lt.s32.totalorder %s13, 3
    %p218 = pnand %p216, %p217
    %p219 = pneg %p218
    // Predicated region
    $region37: #{flc_pooling_conv_blurred.1} parent=5 // pred_check
      _
    $region38: #{flc_pooling_conv_blurred.1} parent=5 // pred_check_branch
      %221 = sbr.rel (%p218) target = $region40
    $region39: #{flc_pooling_conv_blurred.1} parent=5 // pred_region
      %s222 = ssub.s32 %s13, 1
      %s223 = smul.u32 4, %s18
      %p224 = scmp.lt.s32.totalorder %s223, 7
      %s225 = scalar_select %p224, %s223, 7
      %s226 = smul.addr %s225, 16
      %s227 = smul.addr %s226, 4
      %s228 = scalar_lea.vmem %s0, %s227
      %p229 = pneg %p39
      %p230 = pneg %p36
      %p231 = pneg %p60
      %p232 = pneg %p57
      %p233 = pneg %p81
      %p234 = pneg %p78
      %p235 = pneg %p102
      %p236 = pneg %p99
      %p237 = pneg %p123
      %p238 = pneg %p120
      %p239 = pneg %p149
      %p240 = pneg %p146
      %s241 = smul.u32 4, %s18
      %p242 = scmp.lt.s32.totalorder %s241, 7
      %s243 = scalar_select %p242, %s241, 7
      %s244 = smul.addr %s243, 8
      %s245 = scalar_lea.vmem %s5, %s244
      %p246 = pneg %p175
      %p247 = pneg %p172
      %s248 = smul.u32 4, %s18
      %p249 = scmp.lt.s32.totalorder %s248, 7
      %s250 = scalar_select %p249, %s248, 7
      %s251 = smul.addr %s250, 2
      %s252 = smul.addr %s251, 8
      %s253 = scalar_lea.vmem %s6, %s252
      %s254 = smul.u32 4, %s18
      %p255 = scmp.lt.s32.totalorder %s254, 7
      %s256 = scalar_select %p255, %s254, 7
      %s257 = smul.addr %s256, 16
      %s258 = smul.addr %s257, 4
      %s259 = scalar_lea.vmem %s0, %s258
      %s260 = smul.u32 4, %s18
      %s261 = smul.u32 4, %s18
      %p262 = scmp.lt.s32.totalorder %s261, 7
      %s263 = scalar_select %p262, %s261, 7
      %s264 = smul.addr %s263, 8
      %s265 = scalar_lea.vmem %s5, %s264
      %s266 = smul.u32 4, %s18
      %s267 = smul.u32 4, %s18
      %p268 = scmp.lt.s32.totalorder %s267, 7
      %s269 = scalar_select %p268, %s267, 7
      %s270 = smul.addr %s269, 2
      %s271 = smul.addr %s270, 8
      %s272 = scalar_lea.vmem %s6, %s271
      %s273 = smul.u32 4, %s18
      %v275 = vld [vmem:[%s259] sm:$0xf]
      %v276 = vld [vmem:[%s259 + $0x4] sm:$0xf]
      %v277 = vld [vmem:[%s259 + $0x8] sm:$0xf]
      %v278 = vld [vmem:[%s259 + $0xc] sm:$0xf]
      %v279 = vld [vmem:[%s259 + $0x10] sm:$0xf]
      %v280 = vld [vmem:[%s259 + $0x14] sm:$0xf]
      %v281 = vld [vmem:[%s259 + $0x18] sm:$0xf]
      %v282 = vld [vmem:[%s259 + $0x1c] sm:$0xf]
      %v283 = vld [vmem:[%s259 + $0x20] sm:$0xf]
      %v284 = vld [vmem:[%s259 + $0x24] sm:$0xf]
      %v285 = vld [vmem:[%s259 + $0x28] sm:$0xf]
      %v286 = vld [vmem:[%s259 + $0x2c] sm:$0xf]
      %v287 = vld [vmem:[%s259 + $0x30] sm:$0xf]
      %v288 = vld [vmem:[%s259 + $0x34] sm:$0xf]
      %v289 = vld [vmem:[%s259 + $0x38] sm:$0xf]
      %v290 = vld [vmem:[%s259 + $0x3c] sm:$0xf]
      %v291 = vld [vmem:[%s1] sm:$0xf]
      %v292 = vld [vmem:[%s1 + $0x4] sm:$0xf]
      %v295 = vunpack.c.l.b16 %v291
      %v296 = vunpack.c.l.b16 %v292
      %v297 = vpack.c.b16 %v296, %v295
      %v315 = vunpack.c.l.b16 %v275
      %v316 = vunpack.c.l.b16 %v276
      %v317 = vunpack.c.l.b16 %v277
      %v318 = vunpack.c.l.b16 %v278
      %v319 = vunpack.c.l.b16 %v279
      %v320 = vunpack.c.l.b16 %v280
      %v321 = vunpack.c.l.b16 %v281
      %v322 = vunpack.c.l.b16 %v282
      %v323 = vunpack.c.l.b16 %v283
      %v324 = vunpack.c.l.b16 %v284
      %v325 = vunpack.c.l.b16 %v285
      %v326 = vunpack.c.l.b16 %v286
      %v327 = vunpack.c.l.b16 %v287
      %v328 = vunpack.c.l.b16 %v288
      %v329 = vunpack.c.l.b16 %v289
      %v330 = vunpack.c.l.b16 %v290
      %v331 = vpack.c.b16 %v316, %v315
      %v332 = vpack.c.b16 %v318, %v317
      %v333 = vpack.c.b16 %v320, %v319
      %v334 = vpack.c.b16 %v322, %v321
      %v335 = vpack.c.b16 %v324, %v323
      %v336 = vpack.c.b16 %v326, %v325
      %v337 = vpack.c.b16 %v328, %v327
      %v338 = vpack.c.b16 %v330, %v329
      %347 = vmatprep.subr.bf16.mxu0 0
      %348 = vmatpush1.bf16.msra.mxu0 %v331
      %349 = vmatprep.subr.bf16.mxu0 0
      %350 = vmatpush1.bf16.msra.mxu0 %v332
      %351 = vmatprep.subr.bf16.mxu0 0
      %352 = vmatpush1.bf16.msra.mxu0 %v333
      %353 = vmatprep.subr.bf16.mxu0 0
      %354 = vmatpush1.bf16.msra.mxu0 %v334
      %355 = vmatprep.subr.bf16.mxu0 0
      %356 = vmatpush1.bf16.msra.mxu0 %v335
      %357 = vmatprep.subr.bf16.mxu0 0
      %358 = vmatpush1.bf16.msra.mxu0 %v336
      %359 = vmatprep.subr.bf16.mxu0 0
      %360 = vmatpush1.bf16.msra.mxu0 %v337
      %361 = vmatprep.subr.bf16.mxu0 0
      %362 = vmatpush1.bf16.msra.mxu0 %v338
      %363 = vmatprep.subr.bf16.mxu0 0
      %364 = vmatpush1.bf16.msra.mxu0 0
      %365 = vmatprep.subr.bf16.mxu0 0
      %366 = vmatpush1.bf16.msra.mxu0 0
      %367 = vmatprep.subr.bf16.mxu0 0
      %368 = vmatpush1.bf16.msra.mxu0 0
      %369 = vmatprep.subr.bf16.mxu0 0
      %370 = vmatpush1.bf16.msra.mxu0 0
      %371 = vmatprep.subr.bf16.mxu0 0
      %372 = vmatpush1.bf16.msra.mxu0 0
      %373 = vmatprep.subr.bf16.mxu0 0
      %374 = vmatpush1.bf16.msra.mxu0 0
      %375 = vmatprep.subr.bf16.mxu0 0
      %376 = vmatpush1.bf16.msra.mxu0 0
      %377 = vmatprep.subr.bf16.mxu0 0
      %378 = vmatpush1.bf16.msra.mxu0 0
      %379 = vmatprep.mubr.bf16.mxu0 0
      %380 = vmatmul.mubr.bf16.gmra.mrb[0].mxu0 %v297
      %v381 = vpop.f32.mrb[0].mxu0
      %v382 = vadd.f32 0.0, %v381
      %v383 = vpop.f32.mrb[0].mxu0
      %v384 = vpop.f32.mrb[0].mxu0
      %v385 = vadd.f32 0.0, %v384
      %v386 = vpop.f32.mrb[0].mxu0
      %387 = vdwg.mxu0
      %v388 = vpack.c.bf16 %v385, %v382
      %v389 = vld [vmem:[%s2] sm:$0xff]
      %v390 = vld [vmem:[%s2 + $0x8] sm:$0xff]
      %v391 = vld [vmem:[%s2 + $0x10] sm:$0xff]
      %v392 = vld [vmem:[%s2 + $0x18] sm:$0xff]
      %v393 = vld [vmem:[%s2 + $0x20] sm:$0xff]
      %v394 = vld [vmem:[%s2 + $0x28] sm:$0xff]
      %v395 = vld [vmem:[%s2 + $0x30] sm:$0xff]
      %v396 = vld [vmem:[%s2 + $0x38] sm:$0xff]
      %v397 = vld [vmem:[%s2 + $0x40] sm:$0xff]
      %v398 = vld [vmem:[%s2 + $0x48] sm:$0xff]
      %v399 = vld [vmem:[%s2 + $0x50] sm:$0xff]
      %v400 = vld [vmem:[%s2 + $0x58] sm:$0xff]
      %v401 = vld [vmem:[%s2 + $0x60] sm:$0xff]
      %v402 = vld [vmem:[%s2 + $0x68] sm:$0xff]
      %v403 = vld [vmem:[%s2 + $0x70] sm:$0xff]
      %v404 = vld [vmem:[%s2 + $0x78] sm:$0xff]
      %v421 = vunpack.c.l.b16 %v389
      %v422 = vunpack.c.h.b16 %v389
      %v423 = vunpack.c.l.b16 %v390
      %v424 = vunpack.c.h.b16 %v390
      %v425 = vunpack.c.l.b16 %v391
      %v426 = vunpack.c.h.b16 %v391
      %v427 = vunpack.c.l.b16 %v392
      %v428 = vunpack.c.h.b16 %v392
      %v429 = vunpack.c.l.b16 %v393
      %v430 = vunpack.c.h.b16 %v393
      %v431 = vunpack.c.l.b16 %v394
      %v432 = vunpack.c.h.b16 %v394
      %v433 = vunpack.c.l.b16 %v395
      %v434 = vunpack.c.h.b16 %v395
      %v435 = vunpack.c.l.b16 %v396
      %v436 = vunpack.c.h.b16 %v396
      %v437 = vunpack.c.l.b16 %v397
      %v438 = vunpack.c.h.b16 %v397
      %v439 = vunpack.c.l.b16 %v398
      %v440 = vunpack.c.h.b16 %v398
      %v441 = vunpack.c.l.b16 %v399
      %v442 = vunpack.c.h.b16 %v399
      %v443 = vunpack.c.l.b16 %v400
      %v444 = vunpack.c.h.b16 %v400
      %v445 = vunpack.c.l.b16 %v401
      %v446 = vunpack.c.h.b16 %v401
      %v447 = vunpack.c.l.b16 %v402
      %v448 = vunpack.c.h.b16 %v402
      %v449 = vunpack.c.l.b16 %v403
      %v450 = vunpack.c.h.b16 %v403
      %v451 = vunpack.c.l.b16 %v404
      %v452 = vunpack.c.h.b16 %v404
      %v453 = vpack.c.b16 %v423, %v421
      %v454 = vpack.c.b16 %v424, %v422
      %v455 = vpack.c.b16 %v427, %v425
      %v456 = vpack.c.b16 %v428, %v426
      %v457 = vpack.c.b16 %v431, %v429
      %v458 = vpack.c.b16 %v432, %v430
      %v459 = vpack.c.b16 %v435, %v433
      %v460 = vpack.c.b16 %v436, %v434
      %v461 = vpack.c.b16 %v439, %v437
      %v462 = vpack.c.b16 %v440, %v438
      %v463 = vpack.c.b16 %v443, %v441
      %v464 = vpack.c.b16 %v444, %v442
      %v465 = vpack.c.b16 %v447, %v445
      %v466 = vpack.c.b16 %v448, %v446
      %v467 = vpack.c.b16 %v451, %v449
      %v468 = vpack.c.b16 %v452, %v450
      %485 = vmatprep.subr.bf16.mxu0 %v454
      %486 = vmatpush1.bf16.msra.mxu0 %v453
      %487 = vmatprep.subr.bf16.mxu0 %v456
      %488 = vmatpush1.bf16.msra.mxu0 %v455
      %489 = vmatprep.subr.bf16.mxu0 %v458
      %490 = vmatpush1.bf16.msra.mxu0 %v457
      %491 = vmatprep.subr.bf16.mxu0 %v460
      %492 = vmatpush1.bf16.msra.mxu0 %v459
      %493 = vmatprep.subr.bf16.mxu0 %v462
      %494 = vmatpush1.bf16.msra.mxu0 %v461
      %495 = vmatprep.subr.bf16.mxu0 %v464
      %496 = vmatpush1.bf16.msra.mxu0 %v463
      %497 = vmatprep.subr.bf16.mxu0 %v466
      %498 = vmatpush1.bf16.msra.mxu0 %v465
      %499 = vmatprep.subr.bf16.mxu0 %v468
      %500 = vmatpush1.bf16.msra.mxu0 %v467
      %501 = vmatprep.subr.bf16.mxu0 0
      %502 = vmatpush1.bf16.msra.mxu0 0
      %503 = vmatprep.subr.bf16.mxu0 0
      %504 = vmatpush1.bf16.msra.mxu0 0
      %505 = vmatprep.subr.bf16.mxu0 0
      %506 = vmatpush1.bf16.msra.mxu0 0
      %507 = vmatprep.subr.bf16.mxu0 0
      %508 = vmatpush1.bf16.msra.mxu0 0
      %509 = vmatprep.subr.bf16.mxu0 0
      %510 = vmatpush1.bf16.msra.mxu0 0
      %511 = vmatprep.subr.bf16.mxu0 0
      %512 = vmatpush1.bf16.msra.mxu0 0
      %513 = vmatprep.subr.bf16.mxu0 0
      %514 = vmatpush1.bf16.msra.mxu0 0
      %515 = vmatprep.subr.bf16.mxu0 0
      %516 = vmatpush1.bf16.msra.mxu0 0
      %517 = vmatprep.mubr.bf16.mxu0 0
      %518 = vmatmul.mubr.bf16.gmra.mrb[0].mxu0 %v388
      %v519 = vpop.f32.mrb[0].mxu0
      %v520 = vadd.f32 0.0, %v519
      %v521 = vpop.f32.mrb[0].mxu0
      %v522 = vadd.f32 0.0, %v521
      %v523 = vpop.f32.mrb[0].mxu0
      %v524 = vadd.f32 0.0, %v523
      %v525 = vpop.f32.mrb[0].mxu0
      %v526 = vadd.f32 0.0, %v525
      %527 = vdwg.mxu0
      %v528 = vsub.f32 %v520, %v526
      %v529 = vadd.f32 %v522, %v524
      %v530 = vmul.f32 %v528, %v528
      %v531 = vmul.f32 %v529, %v529
      %v532 = vadd.f32 %v530, %v531
      %v533 = vrsqrt.pop %v532
      %v534 = vmul.f32 %v532, %v533
      %vm535 = vcmp.eq.f32.partialorder %v532, inf
      %v536 = vsel %vm535, %v532, %v534
      %vm537 = vcmp.eq.f32.partialorder %v532, 0.0
      %v538 = vand.u32 %v532, 2147483648
      %v539 = vsel %vm537, %v538, %v536
      %540 = vst [vmem:[%s265] sm:$0xff] %v539
      %v541 = vld [vmem:[%s3] sm:$0xf]
      %v542 = vld [vmem:[%s3 + $0x4] sm:$0xf]
      %v543 = vld [vmem:[%s3 + $0x8] sm:$0xf]
      %v544 = vld [vmem:[%s3 + $0xc] sm:$0xf]
      %v549 = vunpack.c.l.b16 %v541
      %v550 = vunpack.c.l.b16 %v542
      %v551 = vunpack.c.l.b16 %v543
      %v552 = vunpack.c.l.b16 %v544
      %v553 = vpack.c.b16 %v550, %v549
      %v554 = vpack.c.b16 %v552, %v551
      %557 = vmatprep.subr.bf16.mxu0 0
      %558 = vmatpush1.bf16.msra.mxu0 %v331
      %559 = vmatprep.subr.bf16.mxu0 0
      %560 = vmatpush1.bf16.msra.mxu0 %v332
      %561 = vmatprep.subr.bf16.mxu0 0
      %562 = vmatpush1.bf16.msra.mxu0 %v333
      %563 = vmatprep.subr.bf16.mxu0 0
      %564 = vmatpush1.bf16.msra.mxu0 %v334
      %565 = vmatprep.subr.bf16.mxu0 0
      %566 = vmatpush1.bf16.msra.mxu0 %v335
      %567 = vmatprep.subr.bf16.mxu0 0
      %568 = vmatpush1.bf16.msra.mxu0 %v336
      %569 = vmatprep.subr.bf16.mxu0 0
      %570 = vmatpush1.bf16.msra.mxu0 %v337
      %571 = vmatprep.subr.bf16.mxu0 0
      %572 = vmatpush1.bf16.msra.mxu0 %v338
      %573 = vmatprep.subr.bf16.mxu0 0
      %574 = vmatpush1.bf16.msra.mxu0 0
      %575 = vmatprep.subr.bf16.mxu0 0
      %576 = vmatpush1.bf16.msra.mxu0 0
      %577 = vmatprep.subr.bf16.mxu0 0
      %578 = vmatpush1.bf16.msra.mxu0 0
      %579 = vmatprep.subr.bf16.mxu0 0
      %580 = vmatpush1.bf16.msra.mxu0 0
      %581 = vmatprep.subr.bf16.mxu0 0
      %582 = vmatpush1.bf16.msra.mxu0 0
      %583 = vmatprep.subr.bf16.mxu0 0
      %584 = vmatpush1.bf16.msra.mxu0 0
      %585 = vmatprep.subr.bf16.mxu0 0
      %586 = vmatpush1.bf16.msra.mxu0 0
      %587 = vmatprep.subr.bf16.mxu0 0
      %588 = vmatpush1.bf16.msra.mxu0 0
      %589 = vmatprep.mubr.bf16.mxu0 0
      %590 = vmatmul.mubr.bf16.gmra.mrb[0].mxu0 %v553
      %v591 = vpop.f32.mrb[0].mxu0
      %v592 = vadd.f32 0.0, %v591
      %v593 = vpop.f32.mrb[0].mxu0
      %v594 = vpop.f32.mrb[0].mxu0
      %v595 = vadd.f32 0.0, %v594
      %v596 = vpop.f32.mrb[0].mxu0
      %597 = vmatprep.mubr.bf16.mxu0 0
      %598 = vmatmul.mubr.bf16.gmra.mrb[0].mxu0 %v554
      %v599 = vpop.f32.mrb[0].mxu0
      %v600 = vadd.f32 0.0, %v599
      %v601 = vpop.f32.mrb[0].mxu0
      %v602 = vpop.f32.mrb[0].mxu0
      %v603 = vadd.f32 0.0, %v602
      %v604 = vpop.f32.mrb[0].mxu0
      %605 = vdwg.mxu0
      %v606 = vpack.c.bf16 %v595, %v592
      %v607 = vpack.c.bf16 %v603, %v600
      %v608 = vld [vmem:[%s4] sm:$0xff]
      %v609 = vld [vmem:[%s4 + $0x8] sm:$0xff]
      %v610 = vld [vmem:[%s4 + $0x10] sm:$0xff]
      %v611 = vld [vmem:[%s4 + $0x18] sm:$0xff]
      %v612 = vld [vmem:[%s4 + $0x20] sm:$0xff]
      %v613 = vld [vmem:[%s4 + $0x28] sm:$0xff]
      %v614 = vld [vmem:[%s4 + $0x30] sm:$0xff]
      %v615 = vld [vmem:[%s4 + $0x38] sm:$0xff]
      %v616 = vld [vmem:[%s4 + $0x40] sm:$0xff]
      %v617 = vld [vmem:[%s4 + $0x48] sm:$0xff]
      %v618 = vld [vmem:[%s4 + $0x50] sm:$0xff]
      %v619 = vld [vmem:[%s4 + $0x58] sm:$0xff]
      %v620 = vld [vmem:[%s4 + $0x60] sm:$0xff]
      %v621 = vld [vmem:[%s4 + $0x68] sm:$0xff]
      %v622 = vld [vmem:[%s4 + $0x70] sm:$0xff]
      %v623 = vld [vmem:[%s4 + $0x78] sm:$0xff]
      %v640 = vunpack.c.l.b16 %v608
      %v641 = vunpack.c.h.b16 %v608
      %v642 = vunpack.c.l.b16 %v609
      %v643 = vunpack.c.h.b16 %v609
      %v644 = vunpack.c.l.b16 %v610
      %v645 = vunpack.c.h.b16 %v610
      %v646 = vunpack.c.l.b16 %v611
      %v647 = vunpack.c.h.b16 %v611
      %v648 = vunpack.c.l.b16 %v612
      %v649 = vunpack.c.h.b16 %v612
      %v650 = vunpack.c.l.b16 %v613
      %v651 = vunpack.c.h.b16 %v613
      %v652 = vunpack.c.l.b16 %v614
      %v653 = vunpack.c.h.b16 %v614
      %v654 = vunpack.c.l.b16 %v615
      %v655 = vunpack.c.h.b16 %v615
      %v656 = vunpack.c.l.b16 %v616
      %v657 = vunpack.c.h.b16 %v616
      %v658 = vunpack.c.l.b16 %v617
      %v659 = vunpack.c.h.b16 %v617
      %v660 = vunpack.c.l.b16 %v618
      %v661 = vunpack.c.h.b16 %v618
      %v662 = vunpack.c.l.b16 %v619
      %v663 = vunpack.c.h.b16 %v619
      %v664 = vunpack.c.l.b16 %v620
      %v665 = vunpack.c.h.b16 %v620
      %v666 = vunpack.c.l.b16 %v621
      %v667 = vunpack.c.h.b16 %v621
      %v668 = vunpack.c.l.b16 %v622
      %v669 = vunpack.c.h.b16 %v622
      %v670 = vunpack.c.l.b16 %v623
      %v671 = vunpack.c.h.b16 %v623
      %v672 = vpack.c.b16 %v642, %v640
      %v673 = vpack.c.b16 %v643, %v641
      %v674 = vpack.c.b16 %v646, %v644
      %v675 = vpack.c.b16 %v647, %v645
      %v676 = vpack.c.b16 %v650, %v648
      %v677 = vpack.c.b16 %v651, %v649
      %v678 = vpack.c.b16 %v654, %v652
      %v679 = vpack.c.b16 %v655, %v653
      %v680 = vpack.c.b16 %v658, %v656
      %v681 = vpack.c.b16 %v659, %v657
      %v682 = vpack.c.b16 %v662, %v660
      %v683 = vpack.c.b16 %v663, %v661
      %v684 = vpack.c.b16 %v666, %v664
      %v685 = vpack.c.b16 %v667, %v665
      %v686 = vpack.c.b16 %v670, %v668
      %v687 = vpack.c.b16 %v671, %v669
      %704 = vmatprep.subr.bf16.mxu0 %v673
      %705 = vmatpush1.bf16.msra.mxu0 %v672
      %706 = vmatprep.subr.bf16.mxu0 %v675
      %707 = vmatpush1.bf16.msra.mxu0 %v674
      %708 = vmatprep.subr.bf16.mxu0 %v677
      %709 = vmatpush1.bf16.msra.mxu0 %v676
      %710 = vmatprep.subr.bf16.mxu0 %v679
      %711 = vmatpush1.bf16.msra.mxu0 %v678
      %712 = vmatprep.subr.bf16.mxu0 %v681
      %713 = vmatpush1.bf16.msra.mxu0 %v680
      %714 = vmatprep.subr.bf16.mxu0 %v683
      %715 = vmatpush1.bf16.msra.mxu0 %v682
      %716 = vmatprep.subr.bf16.mxu0 %v685
      %717 = vmatpush1.bf16.msra.mxu0 %v684
      %718 = vmatprep.subr.bf16.mxu0 %v687
      %719 = vmatpush1.bf16.msra.mxu0 %v686
      %720 = vmatprep.subr.bf16.mxu0 0
      %721 = vmatpush1.bf16.msra.mxu0 0
      %722 = vmatprep.subr.bf16.mxu0 0
      %723 = vmatpush1.bf16.msra.mxu0 0
      %724 = vmatprep.subr.bf16.mxu0 0
      %725 = vmatpush1.bf16.msra.mxu0 0
      %726 = vmatprep.subr.bf16.mxu0 0
      %727 = vmatpush1.bf16.msra.mxu0 0
      %728 = vmatprep.subr.bf16.mxu0 0
      %729 = vmatpush1.bf16.msra.mxu0 0
      %730 = vmatprep.subr.bf16.mxu0 0
      %731 = vmatpush1.bf16.msra.mxu0 0
      %732 = vmatprep.subr.bf16.mxu0 0
      %733 = vmatpush1.bf16.msra.mxu0 0
      %734 = vmatprep.subr.bf16.mxu0 0
      %735 = vmatpush1.bf16.msra.mxu0 0
      %736 = vmatprep.mubr.bf16.mxu0 0
      %737 = vmatmul.mubr.bf16.gmra.mrb[0].mxu0 %v606
      %v738 = vpop.f32.mrb[0].mxu0
      %v739 = vadd.f32 0.0, %v738
      %v740 = vpop.f32.mrb[0].mxu0
      %v741 = vadd.f32 0.0, %v740
      %v742 = vpop.f32.mrb[0].mxu0
      %v743 = vadd.f32 0.0, %v742
      %v744 = vpop.f32.mrb[0].mxu0
      %v745 = vadd.f32 0.0, %v744
      %746 = vmatprep.mubr.bf16.mxu0 0
      %747 = vmatmul.mubr.bf16.gmra.mrb[0].mxu0 %v607
      %v748 = vpop.f32.mrb[0].mxu0
      %v749 = vadd.f32 0.0, %v748
      %v750 = vpop.f32.mrb[0].mxu0
      %v751 = vadd.f32 0.0, %v750
      %v752 = vpop.f32.mrb[0].mxu0
      %v753 = vadd.f32 0.0, %v752
      %v754 = vpop.f32.mrb[0].mxu0
      %v755 = vadd.f32 0.0, %v754
      %756 = vdwg.mxu0
      %v757 = vsub.f32 %v739, %v751
      %v758 = vsub.f32 %v743, %v755
      %v759 = vadd.f32 %v741, %v749
      %v760 = vadd.f32 %v745, %v753
      %v761 = vmul.f32 %v757, %v757
      %v762 = vmul.f32 %v758, %v758
      %v763 = vmul.f32 %v759, %v759
      %v764 = vmul.f32 %v760, %v760
      %v765 = vadd.f32 %v761, %v763
      %v766 = vadd.f32 %v762, %v764
      %v767 = vrsqrt.pop %v765
      %v768 = vmul.f32 %v765, %v767
      %vm769 = vcmp.eq.f32.partialorder %v765, inf
      %v770 = vsel %vm769, %v765, %v768
      %vm771 = vcmp.eq.f32.partialorder %v765, 0.0
      %v772 = vand.u32 %v765, 2147483648
      %v773 = vsel %vm771, %v772, %v770
      %v774 = vrsqrt.pop %v766
      %v775 = vmul.f32 %v766, %v774
      %vm776 = vcmp.eq.f32.partialorder %v766, inf
      %v777 = vsel %vm776, %v766, %v775
      %vm778 = vcmp.eq.f32.partialorder %v766, 0.0
      %v779 = vand.u32 %v766, 2147483648
      %v780 = vsel %vm778, %v779, %v777
      %781 = vst [vmem:[%s272] sm:$0xff] %v773
      %782 = vst [vmem:[%s272 + $0x8] sm:$0xff] %v780
      %s783 = scalar_lea.vmem %s259, 64
      %v784 = vld [vmem:[%s783] sm:$0xf]
      %v785 = vld [vmem:[%s783 + $0x4] sm:$0xf]
      %v786 = vld [vmem:[%s783 + $0x8] sm:$0xf]
      %v787 = vld [vmem:[%s783 + $0xc] sm:$0xf]
      %v788 = vld [vmem:[%s783 + $0x10] sm:$0xf]
      %v789 = vld [vmem:[%s783 + $0x14] sm:$0xf]
      %v790 = vld [vmem:[%s783 + $0x18] sm:$0xf]
      %v791 = vld [vmem:[%s783 + $0x1c] sm:$0xf]
      %v792 = vld [vmem:[%s783 + $0x20] sm:$0xf]
      %v793 = vld [vmem:[%s783 + $0x24] sm:$0xf]
      %v794 = vld [vmem:[%s783 + $0x28] sm:$0xf]
      %v795 = vld [vmem:[%s783 + $0x2c] sm:$0xf]
      %v796 = vld [vmem:[%s783 + $0x30] sm:$0xf]
      %v797 = vld [vmem:[%s783 + $0x34] sm:$0xf]
      %v798 = vld [vmem:[%s783 + $0x38] sm:$0xf]
      %v799 = vld [vmem:[%s783 + $0x3c] sm:$0xf]
      %v800 = vld [vmem:[%s1] sm:$0xf]
      %v801 = vld [vmem:[%s1 + $0x4] sm:$0xf]
      %v804 = vunpack.c.l.b16 %v800
      %v805 = vunpack.c.l.b16 %v801
      %v806 = vpack.c.b16 %v805, %v804
      %v824 = vunpack.c.l.b16 %v784
      %v825 = vunpack.c.l.b16 %v785
      %v826 = vunpack.c.l.b16 %v786
      %v827 = vunpack.c.l.b16 %v787
      %v828 = vunpack.c.l.b16 %v788
      %v829 = vunpack.c.l.b16 %v789
      %v830 = vunpack.c.l.b16 %v790
      %v831 = vunpack.c.l.b16 %v791
      %v832 = vunpack.c.l.b16 %v792
      %v833 = vunpack.c.l.b16 %v793
      %v834 = vunpack.c.l.b16 %v794
      %v835 = vunpack.c.l.b16 %v795
      %v836 = vunpack.c.l.b16 %v796
      %v837 = vunpack.c.l.b16 %v797
      %v838 = vunpack.c.l.b16 %v798
      %v839 = vunpack.c.l.b16 %v799
      %v840 = vpack.c.b16 %v825, %v824
      %v841 = vpack.c.b16 %v827, %v826
      %v842 = vpack.c.b16 %v829, %v828
      %v843 = vpack.c.b16 %v831, %v830
      %v844 = vpack.c.b16 %v833, %v832
      %v845 = vpack.c.b16 %v835, %v834
      %v846 = vpack.c.b16 %v837, %v836
      %v847 = vpack.c.b16 %v839, %v838
      %856 = vmatprep.subr.bf16.mxu0 0
      %857 = vmatpush1.bf16.msra.mxu0 %v840
      %858 = vmatprep.subr.bf16.mxu0 0
      %859 = vmatpush1.bf16.msra.mxu0 %v841
      %860 = vmatprep.subr.bf16.mxu0 0
      %861 = vmatpush1.bf16.msra.mxu0 %v842
      %862 = vmatprep.subr.bf16.mxu0 0
      %863 = vmatpush1.bf16.msra.mxu0 %v843
      %864 = vmatprep.subr.bf16.mxu0 0
      %865 = vmatpush1.bf16.msra.mxu0 %v844
      %866 = vmatprep.subr.bf16.mxu0 0
      %867 = vmatpush1.bf16.msra.mxu0 %v845
      %868 = vmatprep.subr.bf16.mxu0 0
      %869 = vmatpush1.bf16.msra.mxu0 %v846
      %870 = vmatprep.subr.bf16.mxu0 0
      %871 = vmatpush1.bf16.msra.mxu0 %v847
      %872 = vmatprep.subr.bf16.mxu0 0
      %873 = vmatpush1.bf16.msra.mxu0 0
      %874 = vmatprep.subr.bf16.mxu0 0
      %875 = vmatpush1.bf16.msra.mxu0 0
      %876 = vmatprep.subr.bf16.mxu0 0
      %877 = vmatpush1.bf16.msra.mxu0 0
      %878 = vmatprep.subr.bf16.mxu0 0
      %879 = vmatpush1.bf16.msra.mxu0 0
      %880 = vmatprep.subr.bf16.mxu0 0
      %881 = vmatpush1.bf16.msra.mxu0 0
      %882 = vmatprep.subr.bf16.mxu0 0
      %883 = vmatpush1.bf16.msra.mxu0 0
      %884 = vmatprep.subr.bf16.mxu0 0
      %885 = vmatpush1.bf16.msra.mxu0 0
      %886 = vmatprep.subr.bf16.mxu0 0
      %887 = vmatpush1.bf16.msra.mxu0 0
      %888 = vmatprep.mubr.bf16.mxu0 0
      %889 = vmatmul.mubr.bf16.gmra.mrb[0].mxu0 %v806
      %v890 = vpop.f32.mrb[0].mxu0
      %v891 = vadd.f32 0.0, %v890
      %v892 = vpop.f32.mrb[0].mxu0
      %v893 = vpop.f32.mrb[0].mxu0
      %v894 = vadd.f32 0.0, %v893
      %v895 = vpop.f32.mrb[0].mxu0
      %896 = vdwg.mxu0
      %v897 = vpack.c.bf16 %v894, %v891
      %v898 = vld [vmem:[%s2] sm:$0xff]
      %v899 = vld [vmem:[%s2 + $0x8] sm:$0xff]
      %v900 = vld [vmem:[%s2 + $0x10] sm:$0xff]
      %v901 = vld [vmem:[%s2 + $0x18] sm:$0xff]
      %v902 = vld [vmem:[%s2 + $0x20] sm:$0xff]
      %v903 = vld [vmem:[%s2 + $0x28] sm:$0xff]
      %v904 = vld [vmem:[%s2 + $0x30] sm:$0xff]
      %v905 = vld [vmem:[%s2 + $0x38] sm:$0xff]
      %v906 = vld [vmem:[%s2 + $0x40] sm:$0xff]
      %v907 = vld [vmem:[%s2 + $0x48] sm:$0xff]
      %v908 = vld [vmem:[%s2 + $0x50] sm:$0xff]
      %v909 = vld [vmem:[%s2 + $0x58] sm:$0xff]
      %v910 = vld [vmem:[%s2 + $0x60] sm:$0xff]
      %v911 = vld [vmem:[%s2 + $0x68] sm:$0xff]
      %v912 = vld [vmem:[%s2 + $0x70] sm:$0xff]
      %v913 = vld [vmem:[%s2 + $0x78] sm:$0xff]
      %v930 = vunpack.c.l.b16 %v898
      %v931 = vunpack.c.h.b16 %v898
      %v932 = vunpack.c.l.b16 %v899
      %v933 = vunpack.c.h.b16 %v899
      %v934 = vunpack.c.l.b16 %v900
      %v935 = vunpack.c.h.b16 %v900
      %v936 = vunpack.c.l.b16 %v901
      %v937 = vunpack.c.h.b16 %v901
      %v938 = vunpack.c.l.b16 %v902
      %v939 = vunpack.c.h.b16 %v902
      %v940 = vunpack.c.l.b16 %v903
      %v941 = vunpack.c.h.b16 %v903
      %v942 = vunpack.c.l.b16 %v904
      %v943 = vunpack.c.h.b16 %v904
      %v944 = vunpack.c.l.b16 %v905
      %v945 = vunpack.c.h.b16 %v905
      %v946 = vunpack.c.l.b16 %v906
      %v947 = vunpack.c.h.b16 %v906
      %v948 = vunpack.c.l.b16 %v907
      %v949 = vunpack.c.h.b16 %v907
      %v950 = vunpack.c.l.b16 %v908
      %v951 = vunpack.c.h.b16 %v908
      %v952 = vunpack.c.l.b16 %v909
      %v953 = vunpack.c.h.b16 %v909
      %v954 = vunpack.c.l.b16 %v910
      %v955 = vunpack.c.h.b16 %v910
      %v956 = vunpack.c.l.b16 %v911
      %v957 = vunpack.c.h.b16 %v911
      %v958 = vunpack.c.l.b16 %v912
      %v959 = vunpack.c.h.b16 %v912
      %v960 = vunpack.c.l.b16 %v913
      %v961 = vunpack.c.h.b16 %v913
      %v962 = vpack.c.b16 %v932, %v930
      %v963 = vpack.c.b16 %v933, %v931
      %v964 = vpack.c.b16 %v936, %v934
      %v965 = vpack.c.b16 %v937, %v935
      %v966 = vpack.c.b16 %v940, %v938
      %v967 = vpack.c.b16 %v941, %v939
      %v968 = vpack.c.b16 %v944, %v942
      %v969 = vpack.c.b16 %v945, %v943
      %v970 = vpack.c.b16 %v948, %v946
      %v971 = vpack.c.b16 %v949, %v947
      %v972 = vpack.c.b16 %v952, %v950
      %v973 = vpack.c.b16 %v953, %v951
      %v974 = vpack.c.b16 %v956, %v954
      %v975 = vpack.c.b16 %v957, %v955
      %v976 = vpack.c.b16 %v960, %v958
      %v977 = vpack.c.b16 %v961, %v959
      %994 = vmatprep.subr.bf16.mxu0 %v963
      %995 = vmatpush1.bf16.msra.mxu0 %v962
      %996 = vmatprep.subr.bf16.mxu0 %v965
      %997 = vmatpush1.bf16.msra.mxu0 %v964
      %998 = vmatprep.subr.bf16.mxu0 %v967
      %999 = vmatpush1.bf16.msra.mxu0 %v966
      %1000 = vmatprep.subr.bf16.mxu0 %v969
      %1001 = vmatpush1.bf16.msra.mxu0 %v968
      %1002 = vmatprep.subr.bf16.mxu0 %v971
      %1003 = vmatpush1.bf16.msra.mxu0 %v970
      %1004 = vmatprep.subr.bf16.mxu0 %v973
      %1005 = vmatpush1.bf16.msra.mxu0 %v972
      %1006 = vmatprep.subr.bf16.mxu0 %v975
      %1007 = vmatpush1.bf16.msra.mxu0 %v974
      %1008 = vmatprep.subr.bf16.mxu0 %v977
      %1009 = vmatpush1.bf16.msra.mxu0 %v976
      %1010 = vmatprep.subr.bf16.mxu0 0
      %1011 = vmatpush1.bf16.msra.mxu0 0
      %1012 = vmatprep.subr.bf16.mxu0 0
      %1013 = vmatpush1.bf16.msra.mxu0 0
      %1014 = vmatprep.subr.bf16.mxu0 0
      %1015 = vmatpush1.bf16.msra.mxu0 0
      %1016 = vmatprep.subr.bf16.mxu0 0
      %1017 = vmatpush1.bf16.msra.mxu0 0
      %1018 = vmatprep.subr.bf16.mxu0 0
      %1019 = vmatpush1.bf16.msra.mxu0 0
      %1020 = vmatprep.subr.bf16.mxu0 0
      %1021 = vmatpush1.bf16.msra.mxu0 0
      %1022 = vmatprep.subr.bf16.mxu0 0
      %1023 = vmatpush1.bf16.msra.mxu0 0
      %1024 = vmatprep.subr.bf16.mxu0 0
      %1025 = vmatpush1.bf16.msra.mxu0 0
      %1026 = vmatprep.mubr.bf16.mxu0 0
      %1027 = vmatmul.mubr.bf16.gmra.mrb[0].mxu0 %v897
      %v1028 = vpop.f32.mrb[0].mxu0
      %v1029 = vadd.f32 0.0, %v1028
      %v1030 = vpop.f32.mrb[0].mxu0
      %v1031 = vadd.f32 0.0, %v1030
      %v1032 = vpop.f32.mrb[0].mxu0
      %v1033 = vadd.f32 0.0, %v1032
      %v1034 = vpop.f32.mrb[0].mxu0
      %v1035 = vadd.f32 0.0, %v1034
      %1036 = vdwg.mxu0
      %v1037 = vsub.f32 %v1029, %v1035
      %v1038 = vadd.f32 %v1031, %v1033
      %v1039 = vmul.f32 %v1037, %v1037
      %v1040 = vmul.f32 %v1038, %v1038
      %v1041 = vadd.f32 %v1039, %v1040
      %v1042 = vrsqrt.pop %v1041
      %v1043 = vmul.f32 %v1041, %v1042
      %vm1044 = vcmp.eq.f32.partialorder %v1041, inf
      %v1045 = vsel %vm1044, %v1041, %v1043
      %vm1046 = vcmp.eq.f32.partialorder %v1041, 0.0
      %v1047 = vand.u32 %v1041, 2147483648
      %v1048 = vsel %vm1046, %v1047, %v1045
      %s1049 = scalar_lea.vmem %s265, 8
      %1050 = vst [vmem:[%s1049] sm:$0xff] %v1048
      %v1051 = vld [vmem:[%s3] sm:$0xf]
      %v1052 = vld [vmem:[%s3 + $0x4] sm:$0xf]
      %v1053 = vld [vmem:[%s3 + $0x8] sm:$0xf]
      %v1054 = vld [vmem:[%s3 + $0xc] sm:$0xf]
      %v1059 = vunpack.c.l.b16 %v1051
      %v1060 = vunpack.c.l.b16 %v1052
      %v1061 = vunpack.c.l.b16 %v1053
      %v1062 = vunpack.c.l.b16 %v1054
      %v1063 = vpack.c.b16 %v1060, %v1059
      %v1064 = vpack.c.b16 %v1062, %v1061
      %1067 = vmatprep.subr.bf16.mxu0 0
      %1068 = vmatpush1.bf16.msra.mxu0 %v840
      %1069 = vmatprep.subr.bf16.mxu0 0
      %1070 = vmatpush1.bf16.msra.mxu0 %v841
      %1071 = vmatprep.subr.bf16.mxu0 0
      %1072 = vmatpush1.bf16.msra.mxu0 %v842
      %1073 = vmatprep.subr.bf16.mxu0 0
      %1074 = vmatpush1.bf16.msra.mxu0 %v843
      %1075 = vmatprep.subr.bf16.mxu0 0
      %1076 = vmatpush1.bf16.msra.mxu0 %v844
      %1077 = vmatprep.subr.bf16.mxu0 0
      %1078 = vmatpush1.bf16.msra.mxu0 %v845
      %1079 = vmatprep.subr.bf16.mxu0 0
      %1080 = vmatpush1.bf16.msra.mxu0 %v846
      %1081 = vmatprep.subr.bf16.mxu0 0
      %1082 = vmatpush1.bf16.msra.mxu0 %v847
      %1083 = vmatprep.subr.bf16.mxu0 0
      %1084 = vmatpush1.bf16.msra.mxu0 0
      %1085 = vmatprep.subr.bf16.mxu0 0
      %1086 = vmatpush1.bf16.msra.mxu0 0
      %1087 = vmatprep.subr.bf16.mxu0 0
      %1088 = vmatpush1.bf16.msra.mxu0 0
      %1089 = vmatprep.subr.bf16.mxu0 0
      %1090 = vmatpush1.bf16.msra.mxu0 0
      %1091 = vmatprep.subr.bf16.mxu0 0
      %1092 = vmatpush1.bf16.msra.mxu0 0
      %1093 = vmatprep.subr.bf16.mxu0 0
      %1094 = vmatpush1.bf16.msra.mxu0 0
      %1095 = vmatprep.subr.bf16.mxu0 0
      %1096 = vmatpush1.bf16.msra.mxu0 0
      %1097 = vmatprep.subr.bf16.mxu0 0
      %1098 = vmatpush1.bf16.msra.mxu0 0
      %1099 = vmatprep.mubr.bf16.mxu0 0
      %1100 = vmatmul.mubr.bf16.gmra.mrb[0].mxu0 %v1063
      %v1101 = vpop.f32.mrb[0].mxu0
      %v1102 = vadd.f32 0.0, %v1101
      %v1103 = vpop.f32.mrb[0].mxu0
      %v1104 = vpop.f32.mrb[0].mxu0
      %v1105 = vadd.f32 0.0, %v1104
      %v1106 = vpop.f32.mrb[0].mxu0
      %1107 = vmatprep.mubr.bf16.mxu0 0
      %1108 = vmatmul.mubr.bf16.gmra.mrb[0].mxu0 %v1064
      %v1109 = vpop.f32.mrb[0].mxu0
      %v1110 = vadd.f32 0.0, %v1109
      %v1111 = vpop.f32.mrb[0].mxu0
      %v1112 = vpop.f32.mrb[0].mxu0
      %v1113 = vadd.f32 0.0, %v1112
      %v1114 = vpop.f32.mrb[0].mxu0
      %1115 = vdwg.mxu0
      %v1116 = vpack.c.bf16 %v1105, %v1102
      %v1117 = vpack.c.bf16 %v1113, %v1110
      %v1118 = vld [vmem:[%s4] sm:$0xff]
      %v1119 = vld [vmem:[%s4 + $0x8] sm:$0xff]
      %v1120 = vld [vmem:[%s4 + $0x10] sm:$0xff]
      %v1121 = vld [vmem:[%s4 + $0x18] sm:$0xff]
      %v1122 = vld [vmem:[%s4 + $0x20] sm:$0xff]
      %v1123 = vld [vmem:[%s4 + $0x28] sm:$0xff]
      %v1124 = vld [vmem:[%s4 + $0x30] sm:$0xff]
      %v1125 = vld [vmem:[%s4 + $0x38] sm:$0xff]
      %v1126 = vld [vmem:[%s4 + $0x40] sm:$0xff]
      %v1127 = vld [vmem:[%s4 + $0x48] sm:$0xff]
      %v1128 = vld [vmem:[%s4 + $0x50] sm:$0xff]
      %v1129 = vld [vmem:[%s4 + $0x58] sm:$0xff]
      %v1130 = vld [vmem:[%s4 + $0x60] sm:$0xff]
      %v1131 = vld [vmem:[%s4 + $0x68] sm:$0xff]
      %v1132 = vld [vmem:[%s4 + $0x70] sm:$0xff]
      %v1133 = vld [vmem:[%s4 + $0x78] sm:$0xff]
      %v1150 = vunpack.c.l.b16 %v1118
      %v1151 = vunpack.c.h.b16 %v1118
      %v1152 = vunpack.c.l.b16 %v1119
      %v1153 = vunpack.c.h.b16 %v1119
      %v1154 = vunpack.c.l.b16 %v1120
      %v1155 = vunpack.c.h.b16 %v1120
      %v1156 = vunpack.c.l.b16 %v1121
      %v1157 = vunpack.c.h.b16 %v1121
      %v1158 = vunpack.c.l.b16 %v1122
      %v1159 = vunpack.c.h.b16 %v1122
      %v1160 = vunpack.c.l.b16 %v1123
      %v1161 = vunpack.c.h.b16 %v1123
      %v1162 = vunpack.c.l.b16 %v1124
      %v1163 = vunpack.c.h.b16 %v1124
      %v1164 = vunpack.c.l.b16 %v1125
      %v1165 = vunpack.c.h.b16 %v1125
      %v1166 = vunpack.c.l.b16 %v1126
      %v1167 = vunpack.c.h.b16 %v1126
      %v1168 = vunpack.c.l.b16 %v1127
      %v1169 = vunpack.c.h.b16 %v1127
      %v1170 = vunpack.c.l.b16 %v1128
      %v1171 = vunpack.c.h.b16 %v1128
      %v1172 = vunpack.c.l.b16 %v1129
      %v1173 = vunpack.c.h.b16 %v1129
      %v1174 = vunpack.c.l.b16 %v1130
      %v1175 = vunpack.c.h.b16 %v1130
      %v1176 = vunpack.c.l.b16 %v1131
      %v1177 = vunpack.c.h.b16 %v1131
      %v1178 = vunpack.c.l.b16 %v1132
      %v1179 = vunpack.c.h.b16 %v1132
      %v1180 = vunpack.c.l.b16 %v1133
      %v1181 = vunpack.c.h.b16 %v1133
      %v1182 = vpack.c.b16 %v1152, %v1150
      %v1183 = vpack.c.b16 %v1153, %v1151
      %v1184 = vpack.c.b16 %v1156, %v1154
      %v1185 = vpack.c.b16 %v1157, %v1155
      %v1186 = vpack.c.b16 %v1160, %v1158
      %v1187 = vpack.c.b16 %v1161, %v1159
      %v1188 = vpack.c.b16 %v1164, %v1162
      %v1189 = vpack.c.b16 %v1165, %v1163
      %v1190 = vpack.c.b16 %v1168, %v1166
      %v1191 = vpack.c.b16 %v1169, %v1167
      %v1192 = vpack.c.b16 %v1172, %v1170
      %v1193 = vpack.c.b16 %v1173, %v1171
      %v1194 = vpack.c.b16 %v1176, %v1174
      %v1195 = vpack.c.b16 %v1177, %v1175
      %v1196 = vpack.c.b16 %v1180, %v1178
      %v1197 = vpack.c.b16 %v1181, %v1179
      %1214 = vmatprep.subr.bf16.mxu0 %v1183
      %1215 = vmatpush1.bf16.msra.mxu0 %v1182
      %1216 = vmatprep.subr.bf16.mxu0 %v1185
      %1217 = vmatpush1.bf16.msra.mxu0 %v1184
      %1218 = vmatprep.subr.bf16.mxu0 %v1187
      %1219 = vmatpush1.bf16.msra.mxu0 %v1186
      %1220 = vmatprep.subr.bf16.mxu0 %v1189
      %1221 = vmatpush1.bf16.msra.mxu0 %v1188
      %1222 = vmatprep.subr.bf16.mxu0 %v1191
      %1223 = vmatpush1.bf16.msra.mxu0 %v1190
      %1224 = vmatprep.subr.bf16.mxu0 %v1193
      %1225 = vmatpush1.bf16.msra.mxu0 %v1192
      %1226 = vmatprep.subr.bf16.mxu0 %v1195
      %1227 = vmatpush1.bf16.msra.mxu0 %v1194
      %1228 = vmatprep.subr.bf16.mxu0 %v1197
      %1229 = vmatpush1.bf16.msra.mxu0 %v1196
      %1230 = vmatprep.subr.bf16.mxu0 0
      %1231 = vmatpush1.bf16.msra.mxu0 0
      %1232 = vmatprep.subr.bf16.mxu0 0
      %1233 = vmatpush1.bf16.msra.mxu0 0
      %1234 = vmatprep.subr.bf16.mxu0 0
      %1235 = vmatpush1.bf16.msra.mxu0 0
      %1236 = vmatprep.subr.bf16.mxu0 0
      %1237 = vmatpush1.bf16.msra.mxu0 0
      %1238 = vmatprep.subr.bf16.mxu0 0
      %1239 = vmatpush1.bf16.msra.mxu0 0
      %1240 = vmatprep.subr.bf16.mxu0 0
      %1241 = vmatpush1.bf16.msra.mxu0 0
      %1242 = vmatprep.subr.bf16.mxu0 0
      %1243 = vmatpush1.bf16.msra.mxu0 0
      %1244 = vmatprep.subr.bf16.mxu0 0
      %1245 = vmatpush1.bf16.msra.mxu0 0
      %1246 = vmatprep.mubr.bf16.mxu0 0
      %1247 = vmatmul.mubr.bf16.gmra.mrb[0].mxu0 %v1116
      %v1248 = vpop.f32.mrb[0].mxu0
      %v1249 = vadd.f32 0.0, %v1248
      %v1250 = vpop.f32.mrb[0].mxu0
      %v1251 = vadd.f32 0.0, %v1250
      %v1252 = vpop.f32.mrb[0].mxu0
      %v1253 = vadd.f32 0.0, %v1252
      %v1254 = vpop.f32.mrb[0].mxu0
      %v1255 = vadd.f32 0.0, %v1254
      %1256 = vmatprep.mubr.bf16.mxu0 0
      %1257 = vmatmul.mubr.bf16.gmra.mrb[0].mxu0 %v1117
      %v1258 = vpop.f32.mrb[0].mxu0
      %v1259 = vadd.f32 0.0, %v1258
      %v1260 = vpop.f32.mrb[0].mxu0
      %v1261 = vadd.f32 0.0, %v1260
      %v1262 = vpop.f32.mrb[0].mxu0
      %v1263 = vadd.f32 0.0, %v1262
      %v1264 = vpop.f32.mrb[0].mxu0
      %v1265 = vadd.f32 0.0, %v1264
      %1266 = vdwg.mxu0
      %v1267 = vsub.f32 %v1249, %v1261
      %v1268 = vsub.f32 %v1253, %v1265
      %v1269 = vadd.f32 %v1251, %v1259
      %v1270 = vadd.f32 %v1255, %v1263
      %v1271 = vmul.f32 %v1267, %v1267
      %v1272 = vmul.f32 %v1268, %v1268
      %v1273 = vmul.f32 %v1269, %v1269
      %v1274 = vmul.f32 %v1270, %v1270
      %v1275 = vadd.f32 %v1271, %v1273
      %v1276 = vadd.f32 %v1272, %v1274
      %v1277 = vrsqrt.pop %v1275
      %v1278 = vmul.f32 %v1275, %v1277
      %vm1279 = vcmp.eq.f32.partialorder %v1275, inf
      %v1280 = vsel %vm1279, %v1275, %v1278
      %vm1281 = vcmp.eq.f32.partialorder %v1275, 0.0
      %v1282 = vand.u32 %v1275, 2147483648
      %v1283 = vsel %vm1281, %v1282, %v1280
      %v1284 = vrsqrt.pop %v1276
      %v1285 = vmul.f32 %v1276, %v1284
      %vm1286 = vcmp.eq.f32.partialorder %v1276, inf
      %v1287 = vsel %vm1286, %v1276, %v1285
      %vm1288 = vcmp.eq.f32.partialorder %v1276, 0.0
      %v1289 = vand.u32 %v1276, 2147483648
      %v1290 = vsel %vm1288, %v1289, %v1287
      %s1291 = scalar_lea.vmem %s272, 16
      %1292 = vst [vmem:[%s1291] sm:$0xff] %v1283
      %1293 = vst [vmem:[%s1291 + $0x8] sm:$0xff] %v1290
      %s1294 = scalar_lea.vmem %s259, 128
      %v1295 = vld [vmem:[%s1294] sm:$0xf]
      %v1296 = vld [vmem:[%s1294 + $0x4] sm:$0xf]
      %v1297 = vld [vmem:[%s1294 + $0x8] sm:$0xf]
      %v1298 = vld [vmem:[%s1294 + $0xc] sm:$0xf]
      %v1299 = vld [vmem:[%s1294 + $0x10] sm:$0xf]
      %v1300 = vld [vmem:[%s1294 + $0x14] sm:$0xf]
      %v1301 = vld [vmem:[%s1294 + $0x18] sm:$0xf]
      %v1302 = vld [vmem:[%s1294 + $0x1c] sm:$0xf]
      %v1303 = vld [vmem:[%s1294 + $0x20] sm:$0xf]
      %v1304 = vld [vmem:[%s1294 + $0x24] sm:$0xf]
      %v1305 = vld [vmem:[%s1294 + $0x28] sm:$0xf]
      %v1306 = vld [vmem:[%s1294 + $0x2c] sm:$0xf]
      %v1307 = vld [vmem:[%s1294 + $0x30] sm:$0xf]
      %v1308 = vld [vmem:[%s1294 + $0x34] sm:$0xf]
      %v1309 = vld [vmem:[%s1294 + $0x38] sm:$0xf]
      %v1310 = vld [vmem:[%s1294 + $0x3c] sm:$0xf]
      %v1311 = vld [vmem:[%s1] sm:$0xf]
      %v1312 = vld [vmem:[%s1 + $0x4] sm:$0xf]
      %v1315 = vunpack.c.l.b16 %v1311
      %v1316 = vunpack.c.l.b16 %v1312
      %v1317 = vpack.c.b16 %v1316, %v1315
      %v1335 = vunpack.c.l.b16 %v1295
      %v1336 = vunpack.c.l.b16 %v1296
      %v1337 = vunpack.c.l.b16 %v1297
      %v1338 = vunpack.c.l.b16 %v1298
      %v1339 = vunpack.c.l.b16 %v1299
      %v1340 = vunpack.c.l.b16 %v1300
      %v1341 = vunpack.c.l.b16 %v1301
      %v1342 = vunpack.c.l.b16 %v1302
      %v1343 = vunpack.c.l.b16 %v1303
      %v1344 = vunpack.c.l.b16 %v1304
      %v1345 = vunpack.c.l.b16 %v1305
      %v1346 = vunpack.c.l.b16 %v1306
      %v1347 = vunpack.c.l.b16 %v1307
      %v1348 = vunpack.c.l.b16 %v1308
      %v1349 = vunpack.c.l.b16 %v1309
      %v1350 = vunpack.c.l.b16 %v1310
      %v1351 = vpack.c.b16 %v1336, %v1335
      %v1352 = vpack.c.b16 %v1338, %v1337
      %v1353 = vpack.c.b16 %v1340, %v1339
      %v1354 = vpack.c.b16 %v1342, %v1341
      %v1355 = vpack.c.b16 %v1344, %v1343
      %v1356 = vpack.c.b16 %v1346, %v1345
      %v1357 = vpack.c.b16 %v1348, %v1347
      %v1358 = vpack.c.b16 %v1350, %v1349
      %1367 = vmatprep.subr.bf16.mxu0 0
      %1368 = vmatpush1.bf16.msra.mxu0 %v1351
      %1369 = vmatprep.subr.bf16.mxu0 0
      %1370 = vmatpush1.bf16.msra.mxu0 %v1352
      %1371 = vmatprep.subr.bf16.mxu0 0
      %1372 = vmatpush1.bf16.msra.mxu0 %v1353
      %1373 = vmatprep.subr.bf16.mxu0 0
      %1374 = vmatpush1.bf16.msra.mxu0 %v1354
      %1375 = vmatprep.subr.bf16.mxu0 0
      %1376 = vmatpush1.bf16.msra.mxu0 %v1355
      %1377 = vmatprep.subr.bf16.mxu0 0
      %1378 = vmatpush1.bf16.msra.mxu0 %v1356
      %1379 = vmatprep.subr.bf16.mxu0 0
      %1380 = vmatpush1.bf16.msra.mxu0 %v1357
      %1381 = vmatprep.subr.bf16.mxu0 0
      %1382 = vmatpush1.bf16.msra.mxu0 %v1358
      %1383 = vmatprep.subr.bf16.mxu0 0
      %1384 = vmatpush1.bf16.msra.mxu0 0
      %1385 = vmatprep.subr.bf16.mxu0 0
      %1386 = vmatpush1.bf16.msra.mxu0 0
      %1387 = vmatprep.subr.bf16.mxu0 0
      %1388 = vmatpush1.bf16.msra.mxu0 0
      %1389 = vmatprep.subr.bf16.mxu0 0
      %1390 = vmatpush1.bf16.msra.mxu0 0
      %1391 = vmatprep.subr.bf16.mxu0 0
      %1392 = vmatpush1.bf16.msra.mxu0 0
      %1393 = vmatprep.subr.bf16.mxu0 0
      %1394 = vmatpush1.bf16.msra.mxu0 0
      %1395 = vmatprep.subr.bf16.mxu0 0
      %1396 = vmatpush1.bf16.msra.mxu0 0
      %1397 = vmatprep.subr.bf16.mxu0 0
      %1398 = vmatpush1.bf16.msra.mxu0 0
      %1399 = vmatprep.mubr.bf16.mxu0 0
      %1400 = vmatmul.mubr.bf16.gmra.mrb[0].mxu0 %v1317
      %v1401 = vpop.f32.mrb[0].mxu0
      %v1402 = vadd.f32 0.0, %v1401
      %v1403 = vpop.f32.mrb[0].mxu0
      %v1404 = vpop.f32.mrb[0].mxu0
      %v1405 = vadd.f32 0.0, %v1404
      %v1406 = vpop.f32.mrb[0].mxu0
      %1407 = vdwg.mxu0
      %v1408 = vpack.c.bf16 %v1405, %v1402
      %v1409 = vld [vmem:[%s2] sm:$0xff]
      %v1410 = vld [vmem:[%s2 + $0x8] sm:$0xff]
      %v1411 = vld [vmem:[%s2 + $0x10] sm:$0xff]
      %v1412 = vld [vmem:[%s2 + $0x18] sm:$0xff]
      %v1413 = vld [vmem:[%s2 + $0x20] sm:$0xff]
      %v1414 = vld [vmem:[%s2 + $0x28] sm:$0xff]
      %v1415 = vld [vmem:[%s2 + $0x30] sm:$0xff]
      %v1416 = vld [vmem:[%s2 + $0x38] sm:$0xff]
      %v1417 = vld [vmem:[%s2 + $0x40] sm:$0xff]
      %v1418 = vld [vmem:[%s2 + $0x48] sm:$0xff]
      %v1419 = vld [vmem:[%s2 + $0x50] sm:$0xff]
      %v1420 = vld [vmem:[%s2 + $0x58] sm:$0xff]
      %v1421 = vld [vmem:[%s2 + $0x60] sm:$0xff]
      %v1422 = vld [vmem:[%s2 + $0x68] sm:$0xff]
      %v1423 = vld [vmem:[%s2 + $0x70] sm:$0xff]
      %v1424 = vld [vmem:[%s2 + $0x78] sm:$0xff]
      %v1441 = vunpack.c.l.b16 %v1409
      %v1442 = vunpack.c.h.b16 %v1409
      %v1443 = vunpack.c.l.b16 %v1410
      %v1444 = vunpack.c.h.b16 %v1410
      %v1445 = vunpack.c.l.b16 %v1411
      %v1446 = vunpack.c.h.b16 %v1411
      %v1447 = vunpack.c.l.b16 %v1412
      %v1448 = vunpack.c.h.b16 %v1412
      %v1449 = vunpack.c.l.b16 %v1413
      %v1450 = vunpack.c.h.b16 %v1413
      %v1451 = vunpack.c.l.b16 %v1414
      %v1452 = vunpack.c.h.b16 %v1414
      %v1453 = vunpack.c.l.b16 %v1415
      %v1454 = vunpack.c.h.b16 %v1415
      %v1455 = vunpack.c.l.b16 %v1416
      %v1456 = vunpack.c.h.b16 %v1416
      %v1457 = vunpack.c.l.b16 %v1417
      %v1458 = vunpack.c.h.b16 %v1417
      %v1459 = vunpack.c.l.b16 %v1418
      %v1460 = vunpack.c.h.b16 %v1418
      %v1461 = vunpack.c.l.b16 %v1419
      %v1462 = vunpack.c.h.b16 %v1419
      %v1463 = vunpack.c.l.b16 %v1420
      %v1464 = vunpack.c.h.b16 %v1420
      %v1465 = vunpack.c.l.b16 %v1421
      %v1466 = vunpack.c.h.b16 %v1421
      %v1467 = vunpack.c.l.b16 %v1422
      %v1468 = vunpack.c.h.b16 %v1422
      %v1469 = vunpack.c.l.b16 %v1423
      %v1470 = vunpack.c.h.b16 %v1423
      %v1471 = vunpack.c.l.b16 %v1424
      %v1472 = vunpack.c.h.b16 %v1424
      %v1473 = vpack.c.b16 %v1443, %v1441
      %v1474 = vpack.c.b16 %v1444, %v1442
      %v1475 = vpack.c.b16 %v1447, %v1445
      %v1476 = vpack.c.b16 %v1448, %v1446
      %v1477 = vpack.c.b16 %v1451, %v1449
      %v1478 = vpack.c.b16 %v1452, %v1450
      %v1479 = vpack.c.b16 %v1455, %v1453
      %v1480 = vpack.c.b16 %v1456, %v1454
      %v1481 = vpack.c.b16 %v1459, %v1457
      %v1482 = vpack.c.b16 %v1460, %v1458
      %v1483 = vpack.c.b16 %v1463, %v1461
      %v1484 = vpack.c.b16 %v1464, %v1462
      %v1485 = vpack.c.b16 %v1467, %v1465
      %v1486 = vpack.c.b16 %v1468, %v1466
      %v1487 = vpack.c.b16 %v1471, %v1469
      %v1488 = vpack.c.b16 %v1472, %v1470
      %1505 = vmatprep.subr.bf16.mxu0 %v1474
      %1506 = vmatpush1.bf16.msra.mxu0 %v1473
      %1507 = vmatprep.subr.bf16.mxu0 %v1476
      %1508 = vmatpush1.bf16.msra.mxu0 %v1475
      %1509 = vmatprep.subr.bf16.mxu0 %v1478
      %1510 = vmatpush1.bf16.msra.mxu0 %v1477
      %1511 = vmatprep.subr.bf16.mxu0 %v1480
      %1512 = vmatpush1.bf16.msra.mxu0 %v1479
      %1513 = vmatprep.subr.bf16.mxu0 %v1482
      %1514 = vmatpush1.bf16.msra.mxu0 %v1481
      %1515 = vmatprep.subr.bf16.mxu0 %v1484
      %1516 = vmatpush1.bf16.msra.mxu0 %v1483
      %1517 = vmatprep.subr.bf16.mxu0 %v1486
      %1518 = vmatpush1.bf16.msra.mxu0 %v1485
      %1519 = vmatprep.subr.bf16.mxu0 %v1488
      %1520 = vmatpush1.bf16.msra.mxu0 %v1487
      %1521 = vmatprep.subr.bf16.mxu0 0
      %1522 = vmatpush1.bf16.msra.mxu0 0
      %1523 = vmatprep.subr.bf16.mxu0 0
      %1524 = vmatpush1.bf16.msra.mxu0 0
      %1525 = vmatprep.subr.bf16.mxu0 0
      %1526 = vmatpush1.bf16.msra.mxu0 0
      %1527 = vmatprep.subr.bf16.mxu0 0
      %1528 = vmatpush1.bf16.msra.mxu0 0
      %1529 = vmatprep.subr.bf16.mxu0 0
      %1530 = vmatpush1.bf16.msra.mxu0 0
      %1531 = vmatprep.subr.bf16.mxu0 0
      %1532 = vmatpush1.bf16.msra.mxu0 0
      %1533 = vmatprep.subr.bf16.mxu0 0
      %1534 = vmatpush1.bf16.msra.mxu0 0
      %1535 = vmatprep.subr.bf16.mxu0 0
      %1536 = vmatpush1.bf16.msra.mxu0 0
      %1537 = vmatprep.mubr.bf16.mxu0 0
      %1538 = vmatmul.mubr.bf16.gmra.mrb[0].mxu0 %v1408
      %v1539 = vpop.f32.mrb[0].mxu0
      %v1540 = vadd.f32 0.0, %v1539
      %v1541 = vpop.f32.mrb[0].mxu0
      %v1542 = vadd.f32 0.0, %v1541
      %v1543 = vpop.f32.mrb[0].mxu0
      %v1544 = vadd.f32 0.0, %v1543
      %v1545 = vpop.f32.mrb[0].mxu0
      %v1546 = vadd.f32 0.0, %v1545
      %1547 = vdwg.mxu0
      %v1548 = vsub.f32 %v1540, %v1546
      %v1549 = vadd.f32 %v1542, %v1544
      %v1550 = vmul.f32 %v1548, %v1548
      %v1551 = vmul.f32 %v1549, %v1549
      %v1552 = vadd.f32 %v1550, %v1551
      %v1553 = vrsqrt.pop %v1552
      %v1554 = vmul.f32 %v1552, %v1553
      %vm1555 = vcmp.eq.f32.partialorder %v1552, inf
      %v1556 = vsel %vm1555, %v1552, %v1554
      %vm1557 = vcmp.eq.f32.partialorder %v1552, 0.0
      %v1558 = vand.u32 %v1552, 2147483648
      %v1559 = vsel %vm1557, %v1558, %v1556
      %s1560 = scalar_lea.vmem %s265, 16
      %1561 = vst [vmem:[%s1560] sm:$0xff] %v1559
      %v1562 = vld [vmem:[%s3] sm:$0xf]
      %v1563 = vld [vmem:[%s3 + $0x4] sm:$0xf]
      %v1564 = vld [vmem:[%s3 + $0x8] sm:$0xf]
      %v1565 = vld [vmem:[%s3 + $0xc] sm:$0xf]
      %v1570 = vunpack.c.l.b16 %v1562
      %v1571 = vunpack.c.l.b16 %v1563
      %v1572 = vunpack.c.l.b16 %v1564
      %v1573 = vunpack.c.l.b16 %v1565
      %v1574 = vpack.c.b16 %v1571, %v1570
      %v1575 = vpack.c.b16 %v1573, %v1572
      %1578 = vmatprep.subr.bf16.mxu0 0
      %1579 = vmatpush1.bf16.msra.mxu0 %v1351
      %1580 = vmatprep.subr.bf16.mxu0 0
      %1581 = vmatpush1.bf16.msra.mxu0 %v1352
      %1582 = vmatprep.subr.bf16.mxu0 0
      %1583 = vmatpush1.bf16.msra.mxu0 %v1353
      %1584 = vmatprep.subr.bf16.mxu0 0
      %1585 = vmatpush1.bf16.msra.mxu0 %v1354
      %1586 = vmatprep.subr.bf16.mxu0 0
      %1587 = vmatpush1.bf16.msra.mxu0 %v1355
      %1588 = vmatprep.subr.bf16.mxu0 0
      %1589 = vmatpush1.bf16.msra.mxu0 %v1356
      %1590 = vmatprep.subr.bf16.mxu0 0
      %1591 = vmatpush1.bf16.msra.mxu0 %v1357
      %1592 = vmatprep.subr.bf16.mxu0 0
      %1593 = vmatpush1.bf16.msra.mxu0 %v1358
      %1594 = vmatprep.subr.bf16.mxu0 0
      %1595 = vmatpush1.bf16.msra.mxu0 0
      %1596 = vmatprep.subr.bf16.mxu0 0
      %1597 = vmatpush1.bf16.msra.mxu0 0
      %1598 = vmatprep.subr.bf16.mxu0 0
      %1599 = vmatpush1.bf16.msra.mxu0 0
      %1600 = vmatprep.subr.bf16.mxu0 0
      %1601 = vmatpush1.bf16.msra.mxu0 0
      %1602 = vmatprep.subr.bf16.mxu0 0
      %1603 = vmatpush1.bf16.msra.mxu0 0
      %1604 = vmatprep.subr.bf16.mxu0 0
      %1605 = vmatpush1.bf16.msra.mxu0 0
      %1606 = vmatprep.subr.bf16.mxu0 0
      %1607 = vmatpush1.bf16.msra.mxu0 0
      %1608 = vmatprep.subr.bf16.mxu0 0
      %1609 = vmatpush1.bf16.msra.mxu0 0
      %1610 = vmatprep.mubr.bf16.mxu0 0
      %1611 = vmatmul.mubr.bf16.gmra.mrb[0].mxu0 %v1574
      %v1612 = vpop.f32.mrb[0].mxu0
      %v1613 = vadd.f32 0.0, %v1612
      %v1614 = vpop.f32.mrb[0].mxu0
      %v1615 = vpop.f32.mrb[0].mxu0
      %v1616 = vadd.f32 0.0, %v1615
      %v1617 = vpop.f32.mrb[0].mxu0
      %1618 = vmatprep.mubr.bf16.mxu0 0
      %1619 = vmatmul.mubr.bf16.gmra.mrb[0].mxu0 %v1575
      %v1620 = vpop.f32.mrb[0].mxu0
      %v1621 = vadd.f32 0.0, %v1620
      %v1622 = vpop.f32.mrb[0].mxu0
      %v1623 = vpop.f32.mrb[0].mxu0
      %v1624 = vadd.f32 0.0, %v1623
      %v1625 = vpop.f32.mrb[0].mxu0
      %1626 = vdwg.mxu0
      %v1627 = vpack.c.bf16 %v1616, %v1613
      %v1628 = vpack.c.bf16 %v1624, %v1621
      %v1629 = vld [vmem:[%s4] sm:$0xff]
      %v1630 = vld [vmem:[%s4 + $0x8] sm:$0xff]
      %v1631 = vld [vmem:[%s4 + $0x10] sm:$0xff]
      %v1632 = vld [vmem:[%s4 + $0x18] sm:$0xff]
      %v1633 = vld [vmem:[%s4 + $0x20] sm:$0xff]
      %v1634 = vld [vmem:[%s4 + $0x28] sm:$0xff]
      %v1635 = vld [vmem:[%s4 + $0x30] sm:$0xff]
      %v1636 = vld [vmem:[%s4 + $0x38] sm:$0xff]
      %v1637 = vld [vmem:[%s4 + $0x40] sm:$0xff]
      %v1638 = vld [vmem:[%s4 + $0x48] sm:$0xff]
      %v1639 = vld [vmem:[%s4 + $0x50] sm:$0xff]
      %v1640 = vld [vmem:[%s4 + $0x58] sm:$0xff]
      %v1641 = vld [vmem:[%s4 + $0x60] sm:$0xff]
      %v1642 = vld [vmem:[%s4 + $0x68] sm:$0xff]
      %v1643 = vld [vmem:[%s4 + $0x70] sm:$0xff]
      %v1644 = vld [vmem:[%s4 + $0x78] sm:$0xff]
      %v1661 = vunpack.c.l.b16 %v1629
      %v1662 = vunpack.c.h.b16 %v1629
      %v1663 = vunpack.c.l.b16 %v1630
      %v1664 = vunpack.c.h.b16 %v1630
      %v1665 = vunpack.c.l.b16 %v1631
      %v1666 = vunpack.c.h.b16 %v1631
      %v1667 = vunpack.c.l.b16 %v1632
      %v1668 = vunpack.c.h.b16 %v1632
      %v1669 = vunpack.c.l.b16 %v1633
      %v1670 = vunpack.c.h.b16 %v1633
      %v1671 = vunpack.c.l.b16 %v1634
      %v1672 = vunpack.c.h.b16 %v1634
      %v1673 = vunpack.c.l.b16 %v1635
      %v1674 = vunpack.c.h.b16 %v1635
      %v1675 = vunpack.c.l.b16 %v1636
      %v1676 = vunpack.c.h.b16 %v1636
      %v1677 = vunpack.c.l.b16 %v1637
      %v1678 = vunpack.c.h.b16 %v1637
      %v1679 = vunpack.c.l.b16 %v1638
      %v1680 = vunpack.c.h.b16 %v1638
      %v1681 = vunpack.c.l.b16 %v1639
      %v1682 = vunpack.c.h.b16 %v1639
      %v1683 = vunpack.c.l.b16 %v1640
      %v1684 = vunpack.c.h.b16 %v1640
      %v1685 = vunpack.c.l.b16 %v1641
      %v1686 = vunpack.c.h.b16 %v1641
      %v1687 = vunpack.c.l.b16 %v1642
      %v1688 = vunpack.c.h.b16 %v1642
      %v1689 = vunpack.c.l.b16 %v1643
      %v1690 = vunpack.c.h.b16 %v1643
      %v1691 = vunpack.c.l.b16 %v1644
      %v1692 = vunpack.c.h.b16 %v1644
      %v1693 = vpack.c.b16 %v1663, %v1661
      %v1694 = vpack.c.b16 %v1664, %v1662
      %v1695 = vpack.c.b16 %v1667, %v1665
      %v1696 = vpack.c.b16 %v1668, %v1666
      %v1697 = vpack.c.b16 %v1671, %v1669
      %v1698 = vpack.c.b16 %v1672, %v1670
      %v1699 = vpack.c.b16 %v1675, %v1673
      %v1700 = vpack.c.b16 %v1676, %v1674
      %v1701 = vpack.c.b16 %v1679, %v1677
      %v1702 = vpack.c.b16 %v1680, %v1678
      %v1703 = vpack.c.b16 %v1683, %v1681
      %v1704 = vpack.c.b16 %v1684, %v1682
      %v1705 = vpack.c.b16 %v1687, %v1685
      %v1706 = vpack.c.b16 %v1688, %v1686
      %v1707 = vpack.c.b16 %v1691, %v1689
      %v1708 = vpack.c.b16 %v1692, %v1690
      %1725 = vmatprep.subr.bf16.mxu0 %v1694
      %1726 = vmatpush1.bf16.msra.mxu0 %v1693
      %1727 = vmatprep.subr.bf16.mxu0 %v1696
      %1728 = vmatpush1.bf16.msra.mxu0 %v1695
      %1729 = vmatprep.subr.bf16.mxu0 %v1698
      %1730 = vmatpush1.bf16.msra.mxu0 %v1697
      %1731 = vmatprep.subr.bf16.mxu0 %v1700
      %1732 = vmatpush1.bf16.msra.mxu0 %v1699
      %1733 = vmatprep.subr.bf16.mxu0 %v1702
      %1734 = vmatpush1.bf16.msra.mxu0 %v1701
      %1735 = vmatprep.subr.bf16.mxu0 %v1704
      %1736 = vmatpush1.bf16.msra.mxu0 %v1703
      %1737 = vmatprep.subr.bf16.mxu0 %v1706
      %1738 = vmatpush1.bf16.msra.mxu0 %v1705
      %1739 = vmatprep.subr.bf16.mxu0 %v1708
      %1740 = vmatpush1.bf16.msra.mxu0 %v1707
      %1741 = vmatprep.subr.bf16.mxu0 0
      %1742 = vmatpush1.bf16.msra.mxu0 0
      %1743 = vmatprep.subr.bf16.mxu0 0
      %1744 = vmatpush1.bf16.msra.mxu0 0
      %1745 = vmatprep.subr.bf16.mxu0 0
      %1746 = vmatpush1.bf16.msra.mxu0 0
      %1747 = vmatprep.subr.bf16.mxu0 0
      %1748 = vmatpush1.bf16.msra.mxu0 0
      %1749 = vmatprep.subr.bf16.mxu0 0
      %1750 = vmatpush1.bf16.msra.mxu0 0
      %1751 = vmatprep.subr.bf16.mxu0 0
      %1752 = vmatpush1.bf16.msra.mxu0 0
      %1753 = vmatprep.subr.bf16.mxu0 0
      %1754 = vmatpush1.bf16.msra.mxu0 0
      %1755 = vmatprep.subr.bf16.mxu0 0
      %1756 = vmatpush1.bf16.msra.mxu0 0
      %1757 = vmatprep.mubr.bf16.mxu0 0
      %1758 = vmatmul.mubr.bf16.gmra.mrb[0].mxu0 %v1627
      %v1759 = vpop.f32.mrb[0].mxu0
      %v1760 = vadd.f32 0.0, %v1759
      %v1761 = vpop.f32.mrb[0].mxu0
      %v1762 = vadd.f32 0.0, %v1761
      %v1763 = vpop.f32.mrb[0].mxu0
      %v1764 = vadd.f32 0.0, %v1763
      %v1765 = vpop.f32.mrb[0].mxu0
      %v1766 = vadd.f32 0.0, %v1765
      %1767 = vmatprep.mubr.bf16.mxu0 0
      %1768 = vmatmul.mubr.bf16.gmra.mrb[0].mxu0 %v1628
      %v1769 = vpop.f32.mrb[0].mxu0
      %v1770 = vadd.f32 0.0, %v1769
      %v1771 = vpop.f32.mrb[0].mxu0
      %v1772 = vadd.f32 0.0, %v1771
      %v1773 = vpop.f32.mrb[0].mxu0
      %v1774 = vadd.f32 0.0, %v1773
      %v1775 = vpop.f32.mrb[0].mxu0
      %v1776 = vadd.f32 0.0, %v1775
      %1777 = vdwg.mxu0
      %v1778 = vsub.f32 %v1760, %v1772
      %v1779 = vsub.f32 %v1764, %v1776
      %v1780 = vadd.f32 %v1762, %v1770
      %v1781 = vadd.f32 %v1766, %v1774
      %v1782 = vmul.f32 %v1778, %v1778
      %v1783 = vmul.f32 %v1779, %v1779
      %v1784 = vmul.f32 %v1780, %v1780
      %v1785 = vmul.f32 %v1781, %v1781
      %v1786 = vadd.f32 %v1782, %v1784
      %v1787 = vadd.f32 %v1783, %v1785
      %v1788 = vrsqrt.pop %v1786
      %v1789 = vmul.f32 %v1786, %v1788
      %vm1790 = vcmp.eq.f32.partialorder %v1786, inf
      %v1791 = vsel %vm1790, %v1786, %v1789
      %vm1792 = vcmp.eq.f32.partialorder %v1786, 0.0
      %v1793 = vand.u32 %v1786, 2147483648
      %v1794 = vsel %vm1792, %v1793, %v1791
      %v1795 = vrsqrt.pop %v1787
      %v1796 = vmul.f32 %v1787, %v1795
      %vm1797 = vcmp.eq.f32.partialorder %v1787, inf
      %v1798 = vsel %vm1797, %v1787, %v1796
      %vm1799 = vcmp.eq.f32.partialorder %v1787, 0.0
      %v1800 = vand.u32 %v1787, 2147483648
      %v1801 = vsel %vm1799, %v1800, %v1798
      %s1802 = scalar_lea.vmem %s272, 32
      %1803 = vst [vmem:[%s1802] sm:$0xff] %v1794
      %1804 = vst [vmem:[%s1802 + $0x8] sm:$0xff] %v1801
      %s1805 = scalar_lea.vmem %s259, 192
      %v1806 = vld [vmem:[%s1805] sm:$0xf]
      %v1807 = vld [vmem:[%s1805 + $0x4] sm:$0xf]
      %v1808 = vld [vmem:[%s1805 + $0x8] sm:$0xf]
      %v1809 = vld [vmem:[%s1805 + $0xc] sm:$0xf]
      %v1810 = vld [vmem:[%s1805 + $0x10] sm:$0xf]
      %v1811 = vld [vmem:[%s1805 + $0x14] sm:$0xf]
      %v1812 = vld [vmem:[%s1805 + $0x18] sm:$0xf]
      %v1813 = vld [vmem:[%s1805 + $0x1c] sm:$0xf]
      %v1814 = vld [vmem:[%s1805 + $0x20] sm:$0xf]
      %v1815 = vld [vmem:[%s1805 + $0x24] sm:$0xf]
      %v1816 = vld [vmem:[%s1805 + $0x28] sm:$0xf]
      %v1817 = vld [vmem:[%s1805 + $0x2c] sm:$0xf]
      %v1818 = vld [vmem:[%s1805 + $0x30] sm:$0xf]
      %v1819 = vld [vmem:[%s1805 + $0x34] sm:$0xf]
      %v1820 = vld [vmem:[%s1805 + $0x38] sm:$0xf]
      %v1821 = vld [vmem:[%s1805 + $0x3c] sm:$0xf]
      %v1822 = vld [vmem:[%s1] sm:$0xf]
      %v1823 = vld [vmem:[%s1 + $0x4] sm:$0xf]
      %v1826 = vunpack.c.l.b16 %v1822
      %v1827 = vunpack.c.l.b16 %v1823
      %v1828 = vpack.c.b16 %v1827, %v1826
      %v1846 = vunpack.c.l.b16 %v1806
      %v1847 = vunpack.c.l.b16 %v1807
      %v1848 = vunpack.c.l.b16 %v1808
      %v1849 = vunpack.c.l.b16 %v1809
      %v1850 = vunpack.c.l.b16 %v1810
      %v1851 = vunpack.c.l.b16 %v1811
      %v1852 = vunpack.c.l.b16 %v1812
      %v1853 = vunpack.c.l.b16 %v1813
      %v1854 = vunpack.c.l.b16 %v1814
      %v1855 = vunpack.c.l.b16 %v1815
      %v1856 = vunpack.c.l.b16 %v1816
      %v1857 = vunpack.c.l.b16 %v1817
      %v1858 = vunpack.c.l.b16 %v1818
      %v1859 = vunpack.c.l.b16 %v1819
      %v1860 = vunpack.c.l.b16 %v1820
      %v1861 = vunpack.c.l.b16 %v1821
      %v1862 = vpack.c.b16 %v1847, %v1846
      %v1863 = vpack.c.b16 %v1849, %v1848
      %v1864 = vpack.c.b16 %v1851, %v1850
      %v1865 = vpack.c.b16 %v1853, %v1852
      %v1866 = vpack.c.b16 %v1855, %v1854
      %v1867 = vpack.c.b16 %v1857, %v1856
      %v1868 = vpack.c.b16 %v1859, %v1858
      %v1869 = vpack.c.b16 %v1861, %v1860
      %1878 = vmatprep.subr.bf16.mxu0 0
      %1879 = vmatpush1.bf16.msra.mxu0 %v1862
      %1880 = vmatprep.subr.bf16.mxu0 0
      %1881 = vmatpush1.bf16.msra.mxu0 %v1863
      %1882 = vmatprep.subr.bf16.mxu0 0
      %1883 = vmatpush1.bf16.msra.mxu0 %v1864
      %1884 = vmatprep.subr.bf16.mxu0 0
      %1885 = vmatpush1.bf16.msra.mxu0 %v1865
      %1886 = vmatprep.subr.bf16.mxu0 0
      %1887 = vmatpush1.bf16.msra.mxu0 %v1866
      %1888 = vmatprep.subr.bf16.mxu0 0
      %1889 = vmatpush1.bf16.msra.mxu0 %v1867
      %1890 = vmatprep.subr.bf16.mxu0 0
      %1891 = vmatpush1.bf16.msra.mxu0 %v1868
      %1892 = vmatprep.subr.bf16.mxu0 0
      %1893 = vmatpush1.bf16.msra.mxu0 %v1869
      %1894 = vmatprep.subr.bf16.mxu0 0
      %1895 = vmatpush1.bf16.msra.mxu0 0
      %1896 = vmatprep.subr.bf16.mxu0 0
      %1897 = vmatpush1.bf16.msra.mxu0 0
      %1898 = vmatprep.subr.bf16.mxu0 0
      %1899 = vmatpush1.bf16.msra.mxu0 0
      %1900 = vmatprep.subr.bf16.mxu0 0
      %1901 = vmatpush1.bf16.msra.mxu0 0
      %1902 = vmatprep.subr.bf16.mxu0 0
      %1903 = vmatpush1.bf16.msra.mxu0 0
      %1904 = vmatprep.subr.bf16.mxu0 0
      %1905 = vmatpush1.bf16.msra.mxu0 0
      %1906 = vmatprep.subr.bf16.mxu0 0
      %1907 = vmatpush1.bf16.msra.mxu0 0
      %1908 = vmatprep.subr.bf16.mxu0 0
      %1909 = vmatpush1.bf16.msra.mxu0 0
      %1910 = vmatprep.mubr.bf16.mxu0 0
      %1911 = vmatmul.mubr.bf16.gmra.mrb[0].mxu0 %v1828
      %v1912 = vpop.f32.mrb[0].mxu0
      %v1913 = vadd.f32 0.0, %v1912
      %v1914 = vpop.f32.mrb[0].mxu0
      %v1915 = vpop.f32.mrb[0].mxu0
      %v1916 = vadd.f32 0.0, %v1915
      %v1917 = vpop.f32.mrb[0].mxu0
      %1918 = vdwg.mxu0
      %v1919 = vpack.c.bf16 %v1916, %v1913
      %v1920 = vld [vmem:[%s2] sm:$0xff]
      %v1921 = vld [vmem:[%s2 + $0x8] sm:$0xff]
      %v1922 = vld [vmem:[%s2 + $0x10] sm:$0xff]
      %v1923 = vld [vmem:[%s2 + $0x18] sm:$0xff]
      %v1924 = vld [vmem:[%s2 + $0x20] sm:$0xff]
      %v1925 = vld [vmem:[%s2 + $0x28] sm:$0xff]
      %v1926 = vld [vmem:[%s2 + $0x30] sm:$0xff]
      %v1927 = vld [vmem:[%s2 + $0x38] sm:$0xff]
      %v1928 = vld [vmem:[%s2 + $0x40] sm:$0xff]
      %v1929 = vld [vmem:[%s2 + $0x48] sm:$0xff]
      %v1930 = vld [vmem:[%s2 + $0x50] sm:$0xff]
      %v1931 = vld [vmem:[%s2 + $0x58] sm:$0xff]
      %v1932 = vld [vmem:[%s2 + $0x60] sm:$0xff]
      %v1933 = vld [vmem:[%s2 + $0x68] sm:$0xff]
      %v1934 = vld [vmem:[%s2 + $0x70] sm:$0xff]
      %v1935 = vld [vmem:[%s2 + $0x78] sm:$0xff]
      %v1952 = vunpack.c.l.b16 %v1920
      %v1953 = vunpack.c.h.b16 %v1920
      %v1954 = vunpack.c.l.b16 %v1921
      %v1955 = vunpack.c.h.b16 %v1921
      %v1956 = vunpack.c.l.b16 %v1922
      %v1957 = vunpack.c.h.b16 %v1922
      %v1958 = vunpack.c.l.b16 %v1923
      %v1959 = vunpack.c.h.b16 %v1923
      %v1960 = vunpack.c.l.b16 %v1924
      %v1961 = vunpack.c.h.b16 %v1924
      %v1962 = vunpack.c.l.b16 %v1925
      %v1963 = vunpack.c.h.b16 %v1925
      %v1964 = vunpack.c.l.b16 %v1926
      %v1965 = vunpack.c.h.b16 %v1926
      %v1966 = vunpack.c.l.b16 %v1927
      %v1967 = vunpack.c.h.b16 %v1927
      %v1968 = vunpack.c.l.b16 %v1928
      %v1969 = vunpack.c.h.b16 %v1928
      %v1970 = vunpack.c.l.b16 %v1929
      %v1971 = vunpack.c.h.b16 %v1929
      %v1972 = vunpack.c.l.b16 %v1930
      %v1973 = vunpack.c.h.b16 %v1930
      %v1974 = vunpack.c.l.b16 %v1931
      %v1975 = vunpack.c.h.b16 %v1931
      %v1976 = vunpack.c.l.b16 %v1932
      %v1977 = vunpack.c.h.b16 %v1932
      %v1978 = vunpack.c.l.b16 %v1933
      %v1979 = vunpack.c.h.b16 %v1933
      %v1980 = vunpack.c.l.b16 %v1934
      %v1981 = vunpack.c.h.b16 %v1934
      %v1982 = vunpack.c.l.b16 %v1935
      %v1983 = vunpack.c.h.b16 %v1935
      %v1984 = vpack.c.b16 %v1954, %v1952
      %v1985 = vpack.c.b16 %v1955, %v1953
      %v1986 = vpack.c.b16 %v1958, %v1956
      %v1987 = vpack.c.b16 %v1959, %v1957
      %v1988 = vpack.c.b16 %v1962, %v1960
      %v1989 = vpack.c.b16 %v1963, %v1961
      %v1990 = vpack.c.b16 %v1966, %v1964
      %v1991 = vpack.c.b16 %v1967, %v1965
      %v1992 = vpack.c.b16 %v1970, %v1968
      %v1993 = vpack.c.b16 %v1971, %v1969
      %v1994 = vpack.c.b16 %v1974, %v1972
      %v1995 = vpack.c.b16 %v1975, %v1973
      %v1996 = vpack.c.b16 %v1978, %v1976
      %v1997 = vpack.c.b16 %v1979, %v1977
      %v1998 = vpack.c.b16 %v1982, %v1980
      %v1999 = vpack.c.b16 %v1983, %v1981
      %2016 = vmatprep.subr.bf16.mxu0 %v1985
      %2017 = vmatpush1.bf16.msra.mxu0 %v1984
      %2018 = vmatprep.subr.bf16.mxu0 %v1987
      %2019 = vmatpush1.bf16.msra.mxu0 %v1986
      %2020 = vmatprep.subr.bf16.mxu0 %v1989
      %2021 = vmatpush1.bf16.msra.mxu0 %v1988
      %2022 = vmatprep.subr.bf16.mxu0 %v1991
      %2023 = vmatpush1.bf16.msra.mxu0 %v1990
      %2024 = vmatprep.subr.bf16.mxu0 %v1993
      %2025 = vmatpush1.bf16.msra.mxu0 %v1992
      %2026 = vmatprep.subr.bf16.mxu0 %v1995
      %2027 = vmatpush1.bf16.msra.mxu0 %v1994
      %2028 = vmatprep.subr.bf16.mxu0 %v1997
      %2029 = vmatpush1.bf16.msra.mxu0 %v1996
      %2030 = vmatprep.subr.bf16.mxu0 %v1999
      %2031 = vmatpush1.bf16.msra.mxu0 %v1998
      %2032 = vmatprep.subr.bf16.mxu0 0
      %2033 = vmatpush1.bf16.msra.mxu0 0
      %2034 = vmatprep.subr.bf16.mxu0 0
      %2035 = vmatpush1.bf16.msra.mxu0 0
      %2036 = vmatprep.subr.bf16.mxu0 0
      %2037 = vmatpush1.bf16.msra.mxu0 0
      %2038 = vmatprep.subr.bf16.mxu0 0
      %2039 = vmatpush1.bf16.msra.mxu0 0
      %2040 = vmatprep.subr.bf16.mxu0 0
      %2041 = vmatpush1.bf16.msra.mxu0 0
      %2042 = vmatprep.subr.bf16.mxu0 0
      %2043 = vmatpush1.bf16.msra.mxu0 0
      %2044 = vmatprep.subr.bf16.mxu0 0
      %2045 = vmatpush1.bf16.msra.mxu0 0
      %2046 = vmatprep.subr.bf16.mxu0 0
      %2047 = vmatpush1.bf16.msra.mxu0 0
      %2048 = vmatprep.mubr.bf16.mxu0 0
      %2049 = vmatmul.mubr.bf16.gmra.mrb[0].mxu0 %v1919
      %v2050 = vpop.f32.mrb[0].mxu0
      %v2051 = vadd.f32 0.0, %v2050
      %v2052 = vpop.f32.mrb[0].mxu0
      %v2053 = vadd.f32 0.0, %v2052
      %v2054 = vpop.f32.mrb[0].mxu0
      %v2055 = vadd.f32 0.0, %v2054
      %v2056 = vpop.f32.mrb[0].mxu0
      %v2057 = vadd.f32 0.0, %v2056
      %2058 = vdwg.mxu0
      %v2059 = vsub.f32 %v2051, %v2057
      %v2060 = vadd.f32 %v2053, %v2055
      %v2061 = vmul.f32 %v2059, %v2059
      %v2062 = vmul.f32 %v2060, %v2060
      %v2063 = vadd.f32 %v2061, %v2062
      %v2064 = vrsqrt.pop %v2063
      %v2065 = vmul.f32 %v2063, %v2064
      %vm2066 = vcmp.eq.f32.partialorder %v2063, inf
      %v2067 = vsel %vm2066, %v2063, %v2065
      %vm2068 = vcmp.eq.f32.partialorder %v2063, 0.0
      %v2069 = vand.u32 %v2063, 2147483648
      %v2070 = vsel %vm2068, %v2069, %v2067
      %s2071 = scalar_lea.vmem %s265, 24
      %2072 = vst [vmem:[%s2071] sm:$0xff] %v2070
      %v2073 = vld [vmem:[%s3] sm:$0xf]
      %v2074 = vld [vmem:[%s3 + $0x4] sm:$0xf]
      %v2075 = vld [vmem:[%s3 + $0x8] sm:$0xf]
      %v2076 = vld [vmem:[%s3 + $0xc] sm:$0xf]
      %v2081 = vunpack.c.l.b16 %v2073
      %v2082 = vunpack.c.l.b16 %v2074
      %v2083 = vunpack.c.l.b16 %v2075
      %v2084 = vunpack.c.l.b16 %v2076
      %v2085 = vpack.c.b16 %v2082, %v2081
      %v2086 = vpack.c.b16 %v2084, %v2083
      %2089 = vmatprep.subr.bf16.mxu0 0
      %2090 = vmatpush1.bf16.msra.mxu0 %v1862
      %2091 = vmatprep.subr.bf16.mxu0 0
      %2092 = vmatpush1.bf16.msra.mxu0 %v1863
      %2093 = vmatprep.subr.bf16.mxu0 0
      %2094 = vmatpush1.bf16.msra.mxu0 %v1864
      %2095 = vmatprep.subr.bf16.mxu0 0
      %2096 = vmatpush1.bf16.msra.mxu0 %v1865
      %2097 = vmatprep.subr.bf16.mxu0 0
      %2098 = vmatpush1.bf16.msra.mxu0 %v1866
      %2099 = vmatprep.subr.bf16.mxu0 0
      %2100 = vmatpush1.bf16.msra.mxu0 %v1867
      %2101 = vmatprep.subr.bf16.mxu0 0
      %2102 = vmatpush1.bf16.msra.mxu0 %v1868
      %2103 = vmatprep.subr.bf16.mxu0 0
      %2104 = vmatpush1.bf16.msra.mxu0 %v1869
      %2105 = vmatprep.subr.bf16.mxu0 0
      %2106 = vmatpush1.bf16.msra.mxu0 0
      %2107 = vmatprep.subr.bf16.mxu0 0
      %2108 = vmatpush1.bf16.msra.mxu0 0
      %2109 = vmatprep.subr.bf16.mxu0 0
      %2110 = vmatpush1.bf16.msra.mxu0 0
      %2111 = vmatprep.subr.bf16.mxu0 0
      %2112 = vmatpush1.bf16.msra.mxu0 0
      %2113 = vmatprep.subr.bf16.mxu0 0
      %2114 = vmatpush1.bf16.msra.mxu0 0
      %2115 = vmatprep.subr.bf16.mxu0 0
      %2116 = vmatpush1.bf16.msra.mxu0 0
      %2117 = vmatprep.subr.bf16.mxu0 0
      %2118 = vmatpush1.bf16.msra.mxu0 0
      %2119 = vmatprep.subr.bf16.mxu0 0
      %2120 = vmatpush1.bf16.msra.mxu0 0
      %2121 = vmatprep.mubr.bf16.mxu0 0
      %2122 = vmatmul.mubr.bf16.gmra.mrb[0].mxu0 %v2085
      %v2123 = vpop.f32.mrb[0].mxu0
      %v2124 = vadd.f32 0.0, %v2123
      %v2125 = vpop.f32.mrb[0].mxu0
      %v2126 = vpop.f32.mrb[0].mxu0
      %v2127 = vadd.f32 0.0, %v2126
      %v2128 = vpop.f32.mrb[0].mxu0
      %2129 = vmatprep.mubr.bf16.mxu0 0
      %2130 = vmatmul.mubr.bf16.gmra.mrb[0].mxu0 %v2086
      %v2131 = vpop.f32.mrb[0].mxu0
      %v2132 = vadd.f32 0.0, %v2131
      %v2133 = vpop.f32.mrb[0].mxu0
      %v2134 = vpop.f32.mrb[0].mxu0
      %v2135 = vadd.f32 0.0, %v2134
      %v2136 = vpop.f32.mrb[0].mxu0
      %2137 = vdwg.mxu0
      %v2138 = vpack.c.bf16 %v2127, %v2124
      %v2139 = vpack.c.bf16 %v2135, %v2132
      %v2140 = vld [vmem:[%s4] sm:$0xff]
      %v2141 = vld [vmem:[%s4 + $0x8] sm:$0xff]
      %v2142 = vld [vmem:[%s4 + $0x10] sm:$0xff]
      %v2143 = vld [vmem:[%s4 + $0x18] sm:$0xff]
      %v2144 = vld [vmem:[%s4 + $0x20] sm:$0xff]
      %v2145 = vld [vmem:[%s4 + $0x28] sm:$0xff]
      %v2146 = vld [vmem:[%s4 + $0x30] sm:$0xff]
      %v2147 = vld [vmem:[%s4 + $0x38] sm:$0xff]
      %v2148 = vld [vmem:[%s4 + $0x40] sm:$0xff]
      %v2149 = vld [vmem:[%s4 + $0x48] sm:$0xff]
      %v2150 = vld [vmem:[%s4 + $0x50] sm:$0xff]
      %v2151 = vld [vmem:[%s4 + $0x58] sm:$0xff]
      %v2152 = vld [vmem:[%s4 + $0x60] sm:$0xff]
      %v2153 = vld [vmem:[%s4 + $0x68] sm:$0xff]
      %v2154 = vld [vmem:[%s4 + $0x70] sm:$0xff]
      %v2155 = vld [vmem:[%s4 + $0x78] sm:$0xff]
      %v2172 = vunpack.c.l.b16 %v2140
      %v2173 = vunpack.c.h.b16 %v2140
      %v2174 = vunpack.c.l.b16 %v2141
      %v2175 = vunpack.c.h.b16 %v2141
      %v2176 = vunpack.c.l.b16 %v2142
      %v2177 = vunpack.c.h.b16 %v2142
      %v2178 = vunpack.c.l.b16 %v2143
      %v2179 = vunpack.c.h.b16 %v2143
      %v2180 = vunpack.c.l.b16 %v2144
      %v2181 = vunpack.c.h.b16 %v2144
      %v2182 = vunpack.c.l.b16 %v2145
      %v2183 = vunpack.c.h.b16 %v2145
      %v2184 = vunpack.c.l.b16 %v2146
      %v2185 = vunpack.c.h.b16 %v2146
      %v2186 = vunpack.c.l.b16 %v2147
      %v2187 = vunpack.c.h.b16 %v2147
      %v2188 = vunpack.c.l.b16 %v2148
      %v2189 = vunpack.c.h.b16 %v2148
      %v2190 = vunpack.c.l.b16 %v2149
      %v2191 = vunpack.c.h.b16 %v2149
      %v2192 = vunpack.c.l.b16 %v2150
      %v2193 = vunpack.c.h.b16 %v2150
      %v2194 = vunpack.c.l.b16 %v2151
      %v2195 = vunpack.c.h.b16 %v2151
      %v2196 = vunpack.c.l.b16 %v2152
      %v2197 = vunpack.c.h.b16 %v2152
      %v2198 = vunpack.c.l.b16 %v2153
      %v2199 = vunpack.c.h.b16 %v2153
      %v2200 = vunpack.c.l.b16 %v2154
      %v2201 = vunpack.c.h.b16 %v2154
      %v2202 = vunpack.c.l.b16 %v2155
      %v2203 = vunpack.c.h.b16 %v2155
      %v2204 = vpack.c.b16 %v2174, %v2172
      %v2205 = vpack.c.b16 %v2175, %v2173
      %v2206 = vpack.c.b16 %v2178, %v2176
      %v2207 = vpack.c.b16 %v2179, %v2177
      %v2208 = vpack.c.b16 %v2182, %v2180
      %v2209 = vpack.c.b16 %v2183, %v2181
      %v2210 = vpack.c.b16 %v2186, %v2184
      %v2211 = vpack.c.b16 %v2187, %v2185
      %v2212 = vpack.c.b16 %v2190, %v2188
      %v2213 = vpack.c.b16 %v2191, %v2189
      %v2214 = vpack.c.b16 %v2194, %v2192
      %v2215 = vpack.c.b16 %v2195, %v2193
      %v2216 = vpack.c.b16 %v2198, %v2196
      %v2217 = vpack.c.b16 %v2199, %v2197
      %v2218 = vpack.c.b16 %v2202, %v2200
      %v2219 = vpack.c.b16 %v2203, %v2201
      %2236 = vmatprep.subr.bf16.mxu0 %v2205
      %2237 = vmatpush1.bf16.msra.mxu0 %v2204
      %2238 = vmatprep.subr.bf16.mxu0 %v2207
      %2239 = vmatpush1.bf16.msra.mxu0 %v2206
      %2240 = vmatprep.subr.bf16.mxu0 %v2209
      %2241 = vmatpush1.bf16.msra.mxu0 %v2208
      %2242 = vmatprep.subr.bf16.mxu0 %v2211
      %2243 = vmatpush1.bf16.msra.mxu0 %v2210
      %2244 = vmatprep.subr.bf16.mxu0 %v2213
      %2245 = vmatpush1.bf16.msra.mxu0 %v2212
      %2246 = vmatprep.subr.bf16.mxu0 %v2215
      %2247 = vmatpush1.bf16.msra.mxu0 %v2214
      %2248 = vmatprep.subr.bf16.mxu0 %v2217
      %2249 = vmatpush1.bf16.msra.mxu0 %v2216
      %2250 = vmatprep.subr.bf16.mxu0 %v2219
      %2251 = vmatpush1.bf16.msra.mxu0 %v2218
      %2252 = vmatprep.subr.bf16.mxu0 0
      %2253 = vmatpush1.bf16.msra.mxu0 0
      %2254 = vmatprep.subr.bf16.mxu0 0
      %2255 = vmatpush1.bf16.msra.mxu0 0
      %2256 = vmatprep.subr.bf16.mxu0 0
      %2257 = vmatpush1.bf16.msra.mxu0 0
      %2258 = vmatprep.subr.bf16.mxu0 0
      %2259 = vmatpush1.bf16.msra.mxu0 0
      %2260 = vmatprep.subr.bf16.mxu0 0
      %2261 = vmatpush1.bf16.msra.mxu0 0
      %2262 = vmatprep.subr.bf16.mxu0 0
      %2263 = vmatpush1.bf16.msra.mxu0 0
      %2264 = vmatprep.subr.bf16.mxu0 0
      %2265 = vmatpush1.bf16.msra.mxu0 0
      %2266 = vmatprep.subr.bf16.mxu0 0
      %2267 = vmatpush1.bf16.msra.mxu0 0
      %2268 = vmatprep.mubr.bf16.mxu0 0
      %2269 = vmatmul.mubr.bf16.gmra.mrb[0].mxu0 %v2138
      %v2270 = vpop.f32.mrb[0].mxu0
      %v2271 = vadd.f32 0.0, %v2270
      %v2272 = vpop.f32.mrb[0].mxu0
      %v2273 = vadd.f32 0.0, %v2272
      %v2274 = vpop.f32.mrb[0].mxu0
      %v2275 = vadd.f32 0.0, %v2274
      %v2276 = vpop.f32.mrb[0].mxu0
      %v2277 = vadd.f32 0.0, %v2276
      %2278 = vmatprep.mubr.bf16.mxu0 0
      %2279 = vmatmul.mubr.bf16.gmra.mrb[0].mxu0 %v2139
      %v2280 = vpop.f32.mrb[0].mxu0
      %v2281 = vadd.f32 0.0, %v2280
      %v2282 = vpop.f32.mrb[0].mxu0
      %v2283 = vadd.f32 0.0, %v2282
      %v2284 = vpop.f32.mrb[0].mxu0
      %v2285 = vadd.f32 0.0, %v2284
      %v2286 = vpop.f32.mrb[0].mxu0
      %v2287 = vadd.f32 0.0, %v2286
      %2288 = vdwg.mxu0
      %v2289 = vsub.f32 %v2271, %v2283
      %v2290 = vsub.f32 %v2275, %v2287
      %v2291 = vadd.f32 %v2273, %v2281
      %v2292 = vadd.f32 %v2277, %v2285
      %v2293 = vmul.f32 %v2289, %v2289
      %v2294 = vmul.f32 %v2290, %v2290
      %v2295 = vmul.f32 %v2291, %v2291
      %v2296 = vmul.f32 %v2292, %v2292
      %v2297 = vadd.f32 %v2293, %v2295
      %v2298 = vadd.f32 %v2294, %v2296
      %v2299 = vrsqrt.pop %v2297
      %v2300 = vmul.f32 %v2297, %v2299
      %vm2301 = vcmp.eq.f32.partialorder %v2297, inf
      %v2302 = vsel %vm2301, %v2297, %v2300
      %vm2303 = vcmp.eq.f32.partialorder %v2297, 0.0
      %v2304 = vand.u32 %v2297, 2147483648
      %v2305 = vsel %vm2303, %v2304, %v2302
      %v2306 = vrsqrt.pop %v2298
      %v2307 = vmul.f32 %v2298, %v2306
      %vm2308 = vcmp.eq.f32.partialorder %v2298, inf
      %v2309 = vsel %vm2308, %v2298, %v2307
      %vm2310 = vcmp.eq.f32.partialorder %v2298, 0.0
      %v2311 = vand.u32 %v2298, 2147483648
      %v2312 = vsel %vm2310, %v2311, %v2309
      %s2313 = scalar_lea.vmem %s272, 48
      %2314 = vst [vmem:[%s2313] sm:$0xff] %v2305
      %2315 = vst [vmem:[%s2313 + $0x8] sm:$0xff] %v2312
      %s2316 = smul.u32 4, %s18
      %p2317 = scmp.lt.s32.totalorder %s2316, 7
      %s2318 = scalar_select %p2317, %s2316, 7
      %s2319 = smul.addr %s2318, 8
      %s2320 = scalar_lea.vmem %s5, %s2319
      %s2321 = smul.u32 4, %s18
      %p2322 = scmp.lt.s32.totalorder %s2321, 7
      %s2323 = scalar_select %p2322, %s2321, 7
      %s2324 = smul.addr %s2323, 2
      %s2325 = smul.addr %s2324, 8
      %s2326 = scalar_lea.vmem %s6, %s2325
      // Predicated region
      $region41: #{flc_pooling_conv_blurred.1} parent=39 // pred_check
        %p2327 = pneg %p146
      $region42: #{flc_pooling_conv_blurred.1} parent=39 // pred_check_branch
        %2329 = sbr.rel (%p2327) target = $region44
      $region43: #{flc_pooling_conv_blurred.1} parent=39 // pred_region
        %s2330 = smul.u32 4, %s18
      $region44: #{flc_pooling_conv_blurred.1} parent=39 // pred_fallthru
        _
      // Predicated region
      $region45: #{flc_pooling_conv_blurred.1} parent=39 // pred_check
        %p2331 = pneg %p172
      $region46: #{flc_pooling_conv_blurred.1} parent=39 // pred_check_branch
        %2333 = sbr.rel (%p2331) target = $region48
      $region47: #{flc_pooling_conv_blurred.1} parent=39 // pred_region
        %s2334 = smul.u32 4, %s18
      $region48: #{flc_pooling_conv_blurred.1} parent=39 // pred_fallthru
        _
    $region40: #{flc_pooling_conv_blurred.1} parent=5 // pred_fallthru
      _
    %p2335 = scmp.le.s32.totalorder 2, %s13
    // Predicated region
    $region49: #{flc_pooling_conv_blurred.1} parent=5 // pred_check
      %p2336 = pneg %p2335
    $region50: #{flc_pooling_conv_blurred.1} parent=5 // pred_check_branch
      %2338 = sbr.rel (%p2336) target = $region52
    $region51: #{flc_pooling_conv_blurred.1} parent=5 // pred_region
      %s2339 = ssub.s32 %s13, 2
      // Predicated region
      $region53: #{flc_pooling_conv_blurred.1} parent=51 // pred_check
        %p2340 = pneg %p152
      $region54: #{flc_pooling_conv_blurred.1} parent=51 // pred_check_branch
        %2342 = sbr.rel (%p2340) target = $region56
      $region55: #{flc_pooling_conv_blurred.1} parent=51 // pred_region
        %s2343 = smul.u32 4, %s19
        %p2344 = scmp.lt.s32.totalorder %s2343, 7
        %s2345 = scalar_select %p2344, %s2343, 7
        %s2346 = smul.addr %s2345, 8
        %s2347 = scalar_lea.vmem %s5, %s2346
      $region56: #{flc_pooling_conv_blurred.1} parent=51 // pred_fallthru
        _
      // Predicated region
      $region57: #{flc_pooling_conv_blurred.1} parent=51 // pred_check
        %p2348 = pneg %p178
      $region58: #{flc_pooling_conv_blurred.1} parent=51 // pred_check_branch
        %2350 = sbr.rel (%p2348) target = $region60
      $region59: #{flc_pooling_conv_blurred.1} parent=51 // pred_region
        %s2351 = smul.u32 4, %s19
        %p2352 = scmp.lt.s32.totalorder %s2351, 7
        %s2353 = scalar_select %p2352, %s2351, 7
        %s2354 = smul.addr %s2353, 2
        %s2355 = smul.addr %s2354, 8
        %s2356 = scalar_lea.vmem %s6, %s2355
      $region60: #{flc_pooling_conv_blurred.1} parent=51 // pred_fallthru
        _
    $region52: #{flc_pooling_conv_blurred.1} parent=5 // pred_fallthru
      _
  $region6: #{flc_pooling_conv_blurred.1} parent=0 // loop_footer
    %s17 = sadd.s32 1, %s13
  $region7: #{flc_pooling_conv_blurred.1} parent=0 // loop_footer_branch
    %12 = sbr.rel target = $region3
  $region8: #{flc_pooling_conv_blurred.1} parent=0 // loop_exit
    _

</llo_original>
